<compile_context>
chip_gen: v7x
topology: tpu7x:2x2x1
jax: 0.10.0
libtpu: 0.0.40
codegen_flags: <defaults>
</compile_context>

<pallas_src>
import jax
import jax.numpy as jnp
from jax import lax
from jax.experimental import pallas as pl
from jax.experimental.pallas import tpu as pltpu


def _round_up(n, m):
    return (n + m - 1) // m * m


def _gru_rec_kernel(gx_ref, h0_ref,
                    m_hr_ref, m_hi_ref, m_hn_ref,
                    w_hr_ref, w_hi_ref, w_hn_ref,
                    hseq_ref, h_scr):
    """Recurrent part of the BayesianGRUCell; TT timesteps per grid step.

    gx_ref  : (TT, bb, 3H) f32  precomputed input projections (+bias) [r|i|n]
    m_h*    : (bb, H) f32       hidden-side dropout masks (fixed per sequence)
    w_h*    : (H, H)  bf16      hidden-side weights, VMEM-resident
    hseq_ref: (TT, bb, H) f32   output hidden-state slab
    h_scr   : (bb, H) f32       hidden state carried across the time grid axis
    """
    t_blk = pl.program_id(1)

    # INVARIANT: the time axis must remain the innermost ("arbitrary") grid
    # dimension; the carried hidden state in h_scr relies on it.  Do not
    # reorder the grid or mark the time axis "parallel".
    @pl.when(t_blk == 0)
    def _():
        h_scr[...] = h0_ref[...]

    H = h_scr.shape[-1]
    tt_steps = gx_ref.shape[0]

    m_hr = m_hr_ref[...]
    m_hi = m_hi_ref[...]
    m_hn = m_hn_ref[...]
    w_hr = w_hr_ref[...]
    w_hi = w_hi_ref[...]
    w_hn = w_hn_ref[...]

    def mxu(a_f32, w_bf16):
        # bf16 operands, f32 accumulation on the MXU; gate math stays f32.
        return jnp.dot(a_f32.astype(jnp.bfloat16), w_bf16,
                       preferred_element_type=jnp.float32)

    def step(tt, h):
        gx = gx_ref[tt]                                  # (bb, 3H) f32
        hr = mxu(h * m_hr, w_hr)
        hi = mxu(h * m_hi, w_hi)
        hn = mxu(h * m_hn, w_hn)
        r = jax.nn.sigmoid(gx[:, 0 * H:1 * H] + hr)
        i = jax.nn.sigmoid(gx[:, 1 * H:2 * H] + hi)
        n = jnp.tanh(gx[:, 2 * H:3 * H] + r * hn)
        h_new = (1.0 - i) * n + i * h
        hseq_ref[tt] = h_new
        return h_new

    # Unrolled inner time loop: amortizes per-grid-step overhead over TT steps
    # and gives the LLO scheduler enough work to co-issue DMA / MXU / VPU.
    h = lax.fori_loop(0, tt_steps, step, h_scr[...], unroll=True)
    h_scr[...] = h


def bayesian_gru_sequence(x_seq, h0, masks, weights, biases, *,
                          batch_block=None, time_block=8):
    """Runs the BayesianGRUCell over a whole sequence.

    x_seq   : (T, B, I) f32
    h0      : (B, H)    f32   (pass zeros for the module's hx=None case)
    masks   : (m_ir, m_ii, m_in, m_hr, m_hi, m_hn); input-side (B, I),
              hidden-side (B, H); fixed for the whole sequence
    weights : (w_ir, w_ii, w_in, w_hr, w_hi, w_hn), each stored (in, out)
              (transpose of torch nn.Linear.weight)
    biases  : (b_ir, b_ii, b_in), each (1, H)   (bias_hh=False)
    returns : (T, B, H) hidden states; the final hidden state is out[-1]
    """
    f32 = jnp.float32
    T, B, I = x_seq.shape
    H = weights[3].shape[1]
    m_ir, m_ii, m_in, m_hr, m_hi, m_hn = masks
    w_ir, w_ii, w_in, w_hr, w_hi, w_hn = weights
    b_ir, b_ii, b_in = biases

    x_seq = x_seq.astype(f32)
    h0 = h0.astype(f32)

    # ---- hoisted input projections (perf review #1 / #5 / #6) -------------
    # Time-invariant dropout masks => the x-side matmuls are h-independent and
    # run as large M=T*B matmuls outside the recurrence (plain XLA dot, as the
    # review allows), with the bias_ih folded in.  f32 throughout for accuracy.
    def xproj(m, w, b):
        return jnp.einsum('tbi,ih->tbh', x_seq * m[None].astype(f32),
                          w.astype(f32), preferred_element_type=f32) + \
            b.astype(f32)

    gate_x = jnp.concatenate([xproj(m_ir, w_ir, b_ir),
                              xproj(m_ii, w_ii, b_ii),
                              xproj(m_in, w_in, b_in)], axis=-1)   # (T, B, 3H)

    # ---- padding: B -> multiple of 8 sublanes, T -> multiple of TT ---------
    Bp = _round_up(B, 8)
    TT = max(1, min(time_block, T))
    Tp = _round_up(T, TT)
    pb, pt = Bp - B, Tp - T
    gate_x = jnp.pad(gate_x, ((0, pt), (0, pb), (0, 0)))
    h0p = jnp.pad(h0, ((0, pb), (0, 0)))
    m_hr_p = jnp.pad(m_hr.astype(f32), ((0, pb), (0, 0)))
    m_hi_p = jnp.pad(m_hi.astype(f32), ((0, pb), (0, 0)))
    m_hn_p = jnp.pad(m_hn.astype(f32), ((0, pb), (0, 0)))

    w_hr_b = w_hr.astype(jnp.bfloat16)
    w_hi_b = w_hi.astype(jnp.bfloat16)
    w_hn_b = w_hn.astype(jnp.bfloat16)

    # ---- batch blocking (perf review #3 / #4) ------------------------------
    if batch_block is None:
        dk = jax.devices()[0].device_kind.lower()
        # v7x has 2 TensorCores per chip: split the batch so the "parallel"
        # grid axis feeds both cores.  Single block on 1-TC chips (v5e/v6e).
        if "v7" in dk and Bp % 16 == 0:
            batch_block = Bp // 2
        else:
            batch_block = Bp
    bb = batch_block
    assert Bp % bb == 0 and bb % 8 == 0, "batch block must tile padded B"
    nb = Bp // bb
    tb = Tp // TT

    # ---- VMEM budget (perf review: v7x has 64 MiB physical) ----------------
    vmem_bytes = 2 * (3 * H * H * 2            # resident bf16 hidden weights
                      + TT * bb * 3 * H * 4    # gate_x block
                      + TT * bb * H * 4        # output block
                      + 4 * bb * H * 4)        # h0 + 3 hidden masks
    vmem_limit = int(min(max(vmem_bytes + (8 << 20), 32 << 20), 64 << 20))

    resident = lambda shape: pl.BlockSpec(shape, lambda b, t: (0, 0))
    per_batch = lambda shape: pl.BlockSpec(shape, lambda b, t: (b, 0))

    grid_spec = pltpu.PrefetchScalarGridSpec(
        num_scalar_prefetch=0,
        grid=(nb, tb),                       # time innermost => valid h carry
        in_specs=[
            pl.BlockSpec((TT, bb, 3 * H), lambda b, t: (t, b, 0)),  # gate_x
            per_batch((bb, H)),                                     # h0
            per_batch((bb, H)),                                     # m_hr
            per_batch((bb, H)),                                     # m_hi
            per_batch((bb, H)),                                     # m_hn
            resident((H, H)),                                       # w_hr
            resident((H, H)),                                       # w_hi
            resident((H, H)),                                       # w_hn
        ],
        out_specs=pl.BlockSpec((TT, bb, H), lambda b, t: (t, b, 0)),
        scratch_shapes=[pltpu.VMEM((bb, H), jnp.float32)],          # carried h
    )

    h_seq = pl.pallas_call(
        _gru_rec_kernel,
        out_shape=jax.ShapeDtypeStruct((Tp, Bp, H), jnp.float32),
        grid_spec=grid_spec,
        compiler_params=pltpu.CompilerParams(
            dimension_semantics=("parallel", "arbitrary"),
            vmem_limit_bytes=vmem_limit),
    )(gate_x, h0p, m_hr_p, m_hi_p, m_hn_p, w_hr_b, w_hi_b, w_hn_b)

    return h_seq[:T, :B]


def bayesian_gru_cell(x, hx, masks, weights, biases):
    """Single BayesianGRUCell.forward step (== sequence kernel with T=1)."""
    return bayesian_gru_sequence(x[None], hx, masks, weights, biases,
                                 time_block=1)[0]


def _reference_sequence(x_seq, h0, masks, weights, biases):
    """Pure-JAX reference with matching numerics (f32 x-side projections,
    bf16-operand / f32-accumulate hidden-side matmuls, f32 gate math)."""
    m_ir, m_ii, m_in, m_hr, m_hi, m_hn = masks
    w_ir, w_ii, w_in, w_hr, w_hi, w_hn = weights
    b_ir, b_ii, b_in = biases

    def hmm(h, m, w):
        return jnp.dot((h * m).astype(jnp.bfloat16), w.astype(jnp.bfloat16),
                       preferred_element_type=jnp.float32)

    def step(h, x):
        r = jax.nn.sigmoid(jnp.dot(x * m_ir, w_ir) + b_ir + hmm(h, m_hr, w_hr))
        i = jax.nn.sigmoid(jnp.dot(x * m_ii, w_ii) + b_ii + hmm(h, m_hi, w_hi))
        n = jnp.tanh(jnp.dot(x * m_in, w_in) + b_in + r * hmm(h, m_hn, w_hn))
        h = (1.0 - i) * n + i * h
        return h, h

    _, hs = jax.lax.scan(step, h0, x_seq)
    return hs


if __name__ == "__main__":
    T, B = 6, 8
    INPUT_SIZE, HIDDEN_SIZE = 64, 128
    DROPOUT_P = 0.25

    key = jax.random.PRNGKey(0)
    keys = jax.random.split(key, 20)

    # Deterministic nn.Linear-style init: U(-1/sqrt(fan_in), 1/sqrt(fan_in));
    # weights stored as (in, out) == transpose of torch's (out, in).
    def linear_w(k, fan_in, fan_out):
        bound = 1.0 / jnp.sqrt(fan_in)
        return jax.random.uniform(k, (fan_in, fan_out), jnp.float32, -bound, bound)

    def linear_b(k, fan_in, fan_out):
        bound = 1.0 / jnp.sqrt(fan_in)
        return jax.random.uniform(k, (1, fan_out), jnp.float32, -bound, bound)

    weights = (linear_w(keys[0], INPUT_SIZE, HIDDEN_SIZE),
               linear_w(keys[1], INPUT_SIZE, HIDDEN_SIZE),
               linear_w(keys[2], INPUT_SIZE, HIDDEN_SIZE),
               linear_w(keys[3], HIDDEN_SIZE, HIDDEN_SIZE),   # bias_hh=False
               linear_w(keys[4], HIDDEN_SIZE, HIDDEN_SIZE),
               linear_w(keys[5], HIDDEN_SIZE, HIDDEN_SIZE))
    biases = (linear_b(keys[6], INPUT_SIZE, HIDDEN_SIZE),
              linear_b(keys[7], INPUT_SIZE, HIDDEN_SIZE),
              linear_b(keys[8], INPUT_SIZE, HIDDEN_SIZE))

    # SequentialDropout masks: one inverted-dropout mask per stream, reused
    # across the whole sequence (sampled deterministically here).
    keep = 1.0 - DROPOUT_P
    drop_mask = lambda k, shape: (
        jax.random.bernoulli(k, keep, shape).astype(jnp.float32) / keep)
    masks = (drop_mask(keys[9],  (B, INPUT_SIZE)),
             drop_mask(keys[10], (B, INPUT_SIZE)),
             drop_mask(keys[11], (B, INPUT_SIZE)),
             drop_mask(keys[12], (B, HIDDEN_SIZE)),
             drop_mask(keys[13], (B, HIDDEN_SIZE)),
             drop_mask(keys[14], (B, HIDDEN_SIZE)))

    x_seq = jax.random.normal(keys[15], (T, B, INPUT_SIZE), jnp.float32)
    h0 = jax.random.normal(keys[16], (B, HIDDEN_SIZE), jnp.float32)
    # (forward with hx=None corresponds to h0 = zeros; the general h0 covers it.)

    h_seq = bayesian_gru_sequence(x_seq, h0, masks, weights, biases)
    h_seq = jax.block_until_ready(h_seq)

    ref = _reference_sequence(x_seq, h0, masks, weights, biases)
    assert h_seq.shape == (T, B, HIDDEN_SIZE)
    assert jnp.allclose(h_seq, ref, atol=2e-3, rtol=2e-3), float(
        jnp.max(jnp.abs(h_seq - ref)))

    print("KERNEL_OK")
</pallas_src>

<mosaic_0001>
module attributes {stable_mosaic.version = 11 : i64} {
  func.func @_gru_rec_kernel(%arg0: i32, %arg1: i32, %arg2: memref<6x8x384xf32, #tpu.memory_space<vmem>>, %arg3: memref<8x128xf32, #tpu.memory_space<vmem>>, %arg4: memref<8x128xf32, #tpu.memory_space<vmem>>, %arg5: memref<8x128xf32, #tpu.memory_space<vmem>>, %arg6: memref<8x128xf32, #tpu.memory_space<vmem>>, %arg7: memref<128x128xbf16, #tpu.memory_space<vmem>>, %arg8: memref<128x128xbf16, #tpu.memory_space<vmem>>, %arg9: memref<128x128xbf16, #tpu.memory_space<vmem>>, %arg10: memref<6x8x128xf32, #tpu.memory_space<vmem>>, %arg11: memref<8x128xf32, #tpu.memory_space<vmem>>) attributes {dimension_semantics = [#tpu.dimension_semantics<parallel>, #tpu.dimension_semantics<arbitrary>], iteration_bounds = array<i64: 1, 1>, scalar_prefetch = 0 : i64, scratch_operands = 1 : i64, tpu.core_type = #tpu.core_type<tc>, window_params = [{transform_indices = @transform_0, window_bounds = array<i64: 6, 8, 384>}, {transform_indices = @transform_1, window_bounds = array<i64: 8, 128>}, {transform_indices = @transform_2, window_bounds = array<i64: 8, 128>}, {transform_indices = @transform_3, window_bounds = array<i64: 8, 128>}, {transform_indices = @transform_4, window_bounds = array<i64: 8, 128>}, {pipeline_mode = #tpu.pipeline_mode<synchronous>, transform_indices = @transform_5, window_bounds = array<i64: 128, 128>}, {pipeline_mode = #tpu.pipeline_mode<synchronous>, transform_indices = @transform_6, window_bounds = array<i64: 128, 128>}, {pipeline_mode = #tpu.pipeline_mode<synchronous>, transform_indices = @transform_7, window_bounds = array<i64: 128, 128>}, {transform_indices = @transform_8, window_bounds = array<i64: 6, 8, 128>}]} {
    %c0_i32 = arith.constant 0 : i32
    %0 = arith.cmpi eq, %arg1, %c0_i32 : i32
    %1 = arith.extui %0 : i1 to i32
    %c0_i32_0 = arith.constant 0 : i32
    %2 = arith.cmpi ne, %1, %c0_i32_0 : i32
    scf.if %2 {
      %c0_76 = arith.constant 0 : index
      %c0_77 = arith.constant 0 : index
      %245 = vector.load %arg3[%c0_76, %c0_77] : memref<8x128xf32, #tpu.memory_space<vmem>>, vector<8x128xf32>
      %c0_78 = arith.constant 0 : index
      %c0_79 = arith.constant 0 : index
      %246 = vector.load %arg11[%c0_78, %c0_79] : memref<8x128xf32, #tpu.memory_space<vmem>>, vector<8x128xf32>
      tpu.vector_store %arg11[%c0_78, %c0_79], %245 {strides = array<i32>} : memref<8x128xf32, #tpu.memory_space<vmem>>, vector<8x128xf32>,
    } else {
    }
    %c0 = arith.constant 0 : index
    %c0_1 = arith.constant 0 : index
    %3 = vector.load %arg4[%c0, %c0_1] : memref<8x128xf32, #tpu.memory_space<vmem>>, vector<8x128xf32>
    %c0_2 = arith.constant 0 : index
    %c0_3 = arith.constant 0 : index
    %4 = vector.load %arg5[%c0_2, %c0_3] : memref<8x128xf32, #tpu.memory_space<vmem>>, vector<8x128xf32>
    %c0_4 = arith.constant 0 : index
    %c0_5 = arith.constant 0 : index
    %5 = vector.load %arg6[%c0_4, %c0_5] : memref<8x128xf32, #tpu.memory_space<vmem>>, vector<8x128xf32>
    %c0_6 = arith.constant 0 : index
    %c0_7 = arith.constant 0 : index
    %6 = vector.load %arg7[%c0_6, %c0_7] : memref<128x128xbf16, #tpu.memory_space<vmem>>, vector<128x128xbf16>
    %c0_8 = arith.constant 0 : index
    %c0_9 = arith.constant 0 : index
    %7 = vector.load %arg8[%c0_8, %c0_9] : memref<128x128xbf16, #tpu.memory_space<vmem>>, vector<128x128xbf16>
    %c0_10 = arith.constant 0 : index
    %c0_11 = arith.constant 0 : index
    %8 = vector.load %arg9[%c0_10, %c0_11] : memref<128x128xbf16, #tpu.memory_space<vmem>>, vector<128x128xbf16>
    %c0_12 = arith.constant 0 : index
    %c0_13 = arith.constant 0 : index
    %9 = vector.load %arg11[%c0_12, %c0_13] : memref<8x128xf32, #tpu.memory_space<vmem>>, vector<8x128xf32>
    %c0_i32_14 = arith.constant 0 : i32
    %10 = arith.index_cast %c0_i32_14 : i32 to index
    %c0_15 = arith.constant 0 : index
    %c0_16 = arith.constant 0 : index
    %11 = vector.load %arg2[%10, %c0_15, %c0_16] : memref<6x8x384xf32, #tpu.memory_space<vmem>>, vector<1x8x384xf32>
    %12 = vector.shape_cast %11 : vector<1x8x384xf32> to vector<8x384xf32>
    %13 = arith.mulf %9, %3 : vector<8x128xf32>
    %14 = arith.truncf %13 : vector<8x128xf32> to vector<8x128xbf16>
    %cst = arith.constant dense<0.000000e+00> : vector<8x128xf32>
    %15 = tpu.matmul %14, %6, %cst {dimension_numbers = #tpu.dot_dimension_numbers<[1], [0], [0], [1], [0, 0, 1, 1], [], []>} : vector<8x128xbf16>, vector<128x128xbf16>, vector<8x128xf32> -> vector<8x128xf32>
    %16 = arith.mulf %9, %4 : vector<8x128xf32>
    %17 = arith.truncf %16 : vector<8x128xf32> to vector<8x128xbf16>
    %cst_17 = arith.constant dense<0.000000e+00> : vector<8x128xf32>
    %18 = tpu.matmul %17, %7, %cst_17 {dimension_numbers = #tpu.dot_dimension_numbers<[1], [0], [0], [1], [0, 0, 1, 1], [], []>} : vector<8x128xbf16>, vector<128x128xbf16>, vector<8x128xf32> -> vector<8x128xf32>
    %19 = arith.mulf %9, %5 : vector<8x128xf32>
    %20 = arith.truncf %19 : vector<8x128xf32> to vector<8x128xbf16>
    %cst_18 = arith.constant dense<0.000000e+00> : vector<8x128xf32>
    %21 = tpu.matmul %20, %8, %cst_18 {dimension_numbers = #tpu.dot_dimension_numbers<[1], [0], [0], [1], [0, 0, 1, 1], [], []>} : vector<8x128xbf16>, vector<128x128xbf16>, vector<8x128xf32> -> vector<8x128xf32>
    %22 = vector.extract_strided_slice %12 {offsets = [0, 0], sizes = [8, 128], strides = [1, 1]} : vector<8x384xf32> to vector<8x128xf32>
    %23 = arith.addf %22, %15 : vector<8x128xf32>
    %24 = arith.negf %23 : vector<8x128xf32>
    %25 = math.exp %24 : vector<8x128xf32>
    %cst_19 = arith.constant 1.000000e+00 : f32
    %26 = vector.broadcast %cst_19 : f32 to vector<8x128xf32>
    %27 = arith.addf %26, %25 : vector<8x128xf32>
    %28 = arith.divf %26, %27 : vector<8x128xf32>
    %29 = vector.extract_strided_slice %12 {offsets = [0, 128], sizes = [8, 128], strides = [1, 1]} : vector<8x384xf32> to vector<8x128xf32>
    %30 = arith.addf %29, %18 : vector<8x128xf32>
    %31 = arith.negf %30 : vector<8x128xf32>
    %32 = math.exp %31 : vector<8x128xf32>
    %cst_20 = arith.constant 1.000000e+00 : f32
    %33 = vector.broadcast %cst_20 : f32 to vector<8x128xf32>
    %34 = arith.addf %33, %32 : vector<8x128xf32>
    %35 = arith.divf %33, %34 : vector<8x128xf32>
    %36 = vector.extract_strided_slice %12 {offsets = [0, 256], sizes = [8, 128], strides = [1, 1]} : vector<8x384xf32> to vector<8x128xf32>
    %37 = arith.mulf %28, %21 : vector<8x128xf32>
    %38 = arith.addf %36, %37 : vector<8x128xf32>
    %39 = math.tanh %38 : vector<8x128xf32>
    %cst_21 = arith.constant 1.000000e+00 : f32
    %40 = vector.broadcast %cst_21 : f32 to vector<8x128xf32>
    %41 = arith.subf %40, %35 : vector<8x128xf32>
    %42 = arith.mulf %41, %39 : vector<8x128xf32>
    %43 = arith.mulf %35, %9 : vector<8x128xf32>
    %44 = arith.addf %42, %43 : vector<8x128xf32>
    %45 = arith.index_cast %c0_i32_14 : i32 to index
    %c0_22 = arith.constant 0 : index
    %c0_23 = arith.constant 0 : index
    %46 = vector.load %arg10[%45, %c0_22, %c0_23] : memref<6x8x128xf32, #tpu.memory_space<vmem>>, vector<1x8x128xf32>
    %47 = vector.shape_cast %46 : vector<1x8x128xf32> to vector<8x128xf32>
    %48 = vector.shape_cast %44 : vector<8x128xf32> to vector<1x8x128xf32>
    tpu.vector_store %arg10[%45, %c0_22, %c0_23], %48 {strides = array<i32>} : memref<6x8x128xf32, #tpu.memory_space<vmem>>, vector<1x8x128xf32>,
    %c1_i32 = arith.constant 1 : i32
    %49 = arith.index_cast %c1_i32 : i32 to index
    %c0_24 = arith.constant 0 : index
    %c0_25 = arith.constant 0 : index
    %50 = vector.load %arg2[%49, %c0_24, %c0_25] : memref<6x8x384xf32, #tpu.memory_space<vmem>>, vector<1x8x384xf32>
    %51 = vector.shape_cast %50 : vector<1x8x384xf32> to vector<8x384xf32>
    %52 = arith.mulf %44, %3 : vector<8x128xf32>
    %53 = arith.truncf %52 : vector<8x128xf32> to vector<8x128xbf16>
    %cst_26 = arith.constant dense<0.000000e+00> : vector<8x128xf32>
    %54 = tpu.matmul %53, %6, %cst_26 {dimension_numbers = #tpu.dot_dimension_numbers<[1], [0], [0], [1], [0, 0, 1, 1], [], []>} : vector<8x128xbf16>, vector<128x128xbf16>, vector<8x128xf32> -> vector<8x128xf32>
    %55 = arith.mulf %44, %4 : vector<8x128xf32>
    %56 = arith.truncf %55 : vector<8x128xf32> to vector<8x128xbf16>
    %cst_27 = arith.constant dense<0.000000e+00> : vector<8x128xf32>
    %57 = tpu.matmul %56, %7, %cst_27 {dimension_numbers = #tpu.dot_dimension_numbers<[1], [0], [0], [1], [0, 0, 1, 1], [], []>} : vector<8x128xbf16>, vector<128x128xbf16>, vector<8x128xf32> -> vector<8x128xf32>
    %58 = arith.mulf %44, %5 : vector<8x128xf32>
    %59 = arith.truncf %58 : vector<8x128xf32> to vector<8x128xbf16>
    %cst_28 = arith.constant dense<0.000000e+00> : vector<8x128xf32>
    %60 = tpu.matmul %59, %8, %cst_28 {dimension_numbers = #tpu.dot_dimension_numbers<[1], [0], [0], [1], [0, 0, 1, 1], [], []>} : vector<8x128xbf16>, vector<128x128xbf16>, vector<8x128xf32> -> vector<8x128xf32>
    %61 = vector.extract_strided_slice %51 {offsets = [0, 0], sizes = [8, 128], strides = [1, 1]} : vector<8x384xf32> to vector<8x128xf32>
    %62 = arith.addf %61, %54 : vector<8x128xf32>
    %63 = arith.negf %62 : vector<8x128xf32>
    %64 = math.exp %63 : vector<8x128xf32>
    %cst_29 = arith.constant 1.000000e+00 : f32
    %65 = vector.broadcast %cst_29 : f32 to vector<8x128xf32>
    %66 = arith.addf %65, %64 : vector<8x128xf32>
    %67 = arith.divf %65, %66 : vector<8x128xf32>
    %68 = vector.extract_strided_slice %51 {offsets = [0, 128], sizes = [8, 128], strides = [1, 1]} : vector<8x384xf32> to vector<8x128xf32>
    %69 = arith.addf %68, %57 : vector<8x128xf32>
    %70 = arith.negf %69 : vector<8x128xf32>
    %71 = math.exp %70 : vector<8x128xf32>
    %cst_30 = arith.constant 1.000000e+00 : f32
    %72 = vector.broadcast %cst_30 : f32 to vector<8x128xf32>
    %73 = arith.addf %72, %71 : vector<8x128xf32>
    %74 = arith.divf %72, %73 : vector<8x128xf32>
    %75 = vector.extract_strided_slice %51 {offsets = [0, 256], sizes = [8, 128], strides = [1, 1]} : vector<8x384xf32> to vector<8x128xf32>
    %76 = arith.mulf %67, %60 : vector<8x128xf32>
    %77 = arith.addf %75, %76 : vector<8x128xf32>
    %78 = math.tanh %77 : vector<8x128xf32>
    %cst_31 = arith.constant 1.000000e+00 : f32
    %79 = vector.broadcast %cst_31 : f32 to vector<8x128xf32>
    %80 = arith.subf %79, %74 : vector<8x128xf32>
    %81 = arith.mulf %80, %78 : vector<8x128xf32>
    %82 = arith.mulf %74, %44 : vector<8x128xf32>
    %83 = arith.addf %81, %82 : vector<8x128xf32>
    %84 = arith.index_cast %c1_i32 : i32 to index
    %c0_32 = arith.constant 0 : index
    %c0_33 = arith.constant 0 : index
    %85 = vector.load %arg10[%84, %c0_32, %c0_33] : memref<6x8x128xf32, #tpu.memory_space<vmem>>, vector<1x8x128xf32>
    %86 = vector.shape_cast %85 : vector<1x8x128xf32> to vector<8x128xf32>
    %87 = vector.shape_cast %83 : vector<8x128xf32> to vector<1x8x128xf32>
    tpu.vector_store %arg10[%84, %c0_32, %c0_33], %87 {strides = array<i32>} : memref<6x8x128xf32, #tpu.memory_space<vmem>>, vector<1x8x128xf32>,
    %c2_i32 = arith.constant 2 : i32
    %88 = arith.index_cast %c2_i32 : i32 to index
    %c0_34 = arith.constant 0 : index
    %c0_35 = arith.constant 0 : index
    %89 = vector.load %arg2[%88, %c0_34, %c0_35] : memref<6x8x384xf32, #tpu.memory_space<vmem>>, vector<1x8x384xf32>
    %90 = vector.shape_cast %89 : vector<1x8x384xf32> to vector<8x384xf32>
    %91 = arith.mulf %83, %3 : vector<8x128xf32>
    %92 = arith.truncf %91 : vector<8x128xf32> to vector<8x128xbf16>
    %cst_36 = arith.constant dense<0.000000e+00> : vector<8x128xf32>
    %93 = tpu.matmul %92, %6, %cst_36 {dimension_numbers = #tpu.dot_dimension_numbers<[1], [0], [0], [1], [0, 0, 1, 1], [], []>} : vector<8x128xbf16>, vector<128x128xbf16>, vector<8x128xf32> -> vector<8x128xf32>
    %94 = arith.mulf %83, %4 : vector<8x128xf32>
    %95 = arith.truncf %94 : vector<8x128xf32> to vector<8x128xbf16>
    %cst_37 = arith.constant dense<0.000000e+00> : vector<8x128xf32>
    %96 = tpu.matmul %95, %7, %cst_37 {dimension_numbers = #tpu.dot_dimension_numbers<[1], [0], [0], [1], [0, 0, 1, 1], [], []>} : vector<8x128xbf16>, vector<128x128xbf16>, vector<8x128xf32> -> vector<8x128xf32>
    %97 = arith.mulf %83, %5 : vector<8x128xf32>
    %98 = arith.truncf %97 : vector<8x128xf32> to vector<8x128xbf16>
    %cst_38 = arith.constant dense<0.000000e+00> : vector<8x128xf32>
    %99 = tpu.matmul %98, %8, %cst_38 {dimension_numbers = #tpu.dot_dimension_numbers<[1], [0], [0], [1], [0, 0, 1, 1], [], []>} : vector<8x128xbf16>, vector<128x128xbf16>, vector<8x128xf32> -> vector<8x128xf32>
    %100 = vector.extract_strided_slice %90 {offsets = [0, 0], sizes = [8, 128], strides = [1, 1]} : vector<8x384xf32> to vector<8x128xf32>
    %101 = arith.addf %100, %93 : vector<8x128xf32>
    %102 = arith.negf %101 : vector<8x128xf32>
    %103 = math.exp %102 : vector<8x128xf32>
    %cst_39 = arith.constant 1.000000e+00 : f32
    %104 = vector.broadcast %cst_39 : f32 to vector<8x128xf32>
    %105 = arith.addf %104, %103 : vector<8x128xf32>
    %106 = arith.divf %104, %105 : vector<8x128xf32>
    %107 = vector.extract_strided_slice %90 {offsets = [0, 128], sizes = [8, 128], strides = [1, 1]} : vector<8x384xf32> to vector<8x128xf32>
    %108 = arith.addf %107, %96 : vector<8x128xf32>
    %109 = arith.negf %108 : vector<8x128xf32>
    %110 = math.exp %109 : vector<8x128xf32>
    %cst_40 = arith.constant 1.000000e+00 : f32
    %111 = vector.broadcast %cst_40 : f32 to vector<8x128xf32>
    %112 = arith.addf %111, %110 : vector<8x128xf32>
    %113 = arith.divf %111, %112 : vector<8x128xf32>
    %114 = vector.extract_strided_slice %90 {offsets = [0, 256], sizes = [8, 128], strides = [1, 1]} : vector<8x384xf32> to vector<8x128xf32>
    %115 = arith.mulf %106, %99 : vector<8x128xf32>
    %116 = arith.addf %114, %115 : vector<8x128xf32>
    %117 = math.tanh %116 : vector<8x128xf32>
    %cst_41 = arith.constant 1.000000e+00 : f32
    %118 = vector.broadcast %cst_41 : f32 to vector<8x128xf32>
    %119 = arith.subf %118, %113 : vector<8x128xf32>
    %120 = arith.mulf %119, %117 : vector<8x128xf32>
    %121 = arith.mulf %113, %83 : vector<8x128xf32>
    %122 = arith.addf %120, %121 : vector<8x128xf32>
    %123 = arith.index_cast %c2_i32 : i32 to index
    %c0_42 = arith.constant 0 : index
    %c0_43 = arith.constant 0 : index
    %124 = vector.load %arg10[%123, %c0_42, %c0_43] : memref<6x8x128xf32, #tpu.memory_space<vmem>>, vector<1x8x128xf32>
    %125 = vector.shape_cast %124 : vector<1x8x128xf32> to vector<8x128xf32>
    %126 = vector.shape_cast %122 : vector<8x128xf32> to vector<1x8x128xf32>
    tpu.vector_store %arg10[%123, %c0_42, %c0_43], %126 {strides = array<i32>} : memref<6x8x128xf32, #tpu.memory_space<vmem>>, vector<1x8x128xf32>,
    %c3_i32 = arith.constant 3 : i32
    %127 = arith.index_cast %c3_i32 : i32 to index
    %c0_44 = arith.constant 0 : index
    %c0_45 = arith.constant 0 : index
    %128 = vector.load %arg2[%127, %c0_44, %c0_45] : memref<6x8x384xf32, #tpu.memory_space<vmem>>, vector<1x8x384xf32>
    %129 = vector.shape_cast %128 : vector<1x8x384xf32> to vector<8x384xf32>
    %130 = arith.mulf %122, %3 : vector<8x128xf32>
    %131 = arith.truncf %130 : vector<8x128xf32> to vector<8x128xbf16>
    %cst_46 = arith.constant dense<0.000000e+00> : vector<8x128xf32>
    %132 = tpu.matmul %131, %6, %cst_46 {dimension_numbers = #tpu.dot_dimension_numbers<[1], [0], [0], [1], [0, 0, 1, 1], [], []>} : vector<8x128xbf16>, vector<128x128xbf16>, vector<8x128xf32> -> vector<8x128xf32>
    %133 = arith.mulf %122, %4 : vector<8x128xf32>
    %134 = arith.truncf %133 : vector<8x128xf32> to vector<8x128xbf16>
    %cst_47 = arith.constant dense<0.000000e+00> : vector<8x128xf32>
    %135 = tpu.matmul %134, %7, %cst_47 {dimension_numbers = #tpu.dot_dimension_numbers<[1], [0], [0], [1], [0, 0, 1, 1], [], []>} : vector<8x128xbf16>, vector<128x128xbf16>, vector<8x128xf32> -> vector<8x128xf32>
    %136 = arith.mulf %122, %5 : vector<8x128xf32>
    %137 = arith.truncf %136 : vector<8x128xf32> to vector<8x128xbf16>
    %cst_48 = arith.constant dense<0.000000e+00> : vector<8x128xf32>
    %138 = tpu.matmul %137, %8, %cst_48 {dimension_numbers = #tpu.dot_dimension_numbers<[1], [0], [0], [1], [0, 0, 1, 1], [], []>} : vector<8x128xbf16>, vector<128x128xbf16>, vector<8x128xf32> -> vector<8x128xf32>
    %139 = vector.extract_strided_slice %129 {offsets = [0, 0], sizes = [8, 128], strides = [1, 1]} : vector<8x384xf32> to vector<8x128xf32>
    %140 = arith.addf %139, %132 : vector<8x128xf32>
    %141 = arith.negf %140 : vector<8x128xf32>
    %142 = math.exp %141 : vector<8x128xf32>
    %cst_49 = arith.constant 1.000000e+00 : f32
    %143 = vector.broadcast %cst_49 : f32 to vector<8x128xf32>
    %144 = arith.addf %143, %142 : vector<8x128xf32>
    %145 = arith.divf %143, %144 : vector<8x128xf32>
    %146 = vector.extract_strided_slice %129 {offsets = [0, 128], sizes = [8, 128], strides = [1, 1]} : vector<8x384xf32> to vector<8x128xf32>
    %147 = arith.addf %146, %135 : vector<8x128xf32>
    %148 = arith.negf %147 : vector<8x128xf32>
    %149 = math.exp %148 : vector<8x128xf32>
    %cst_50 = arith.constant 1.000000e+00 : f32
    %150 = vector.broadcast %cst_50 : f32 to vector<8x128xf32>
    %151 = arith.addf %150, %149 : vector<8x128xf32>
    %152 = arith.divf %150, %151 : vector<8x128xf32>
    %153 = vector.extract_strided_slice %129 {offsets = [0, 256], sizes = [8, 128], strides = [1, 1]} : vector<8x384xf32> to vector<8x128xf32>
    %154 = arith.mulf %145, %138 : vector<8x128xf32>
    %155 = arith.addf %153, %154 : vector<8x128xf32>
    %156 = math.tanh %155 : vector<8x128xf32>
    %cst_51 = arith.constant 1.000000e+00 : f32
    %157 = vector.broadcast %cst_51 : f32 to vector<8x128xf32>
    %158 = arith.subf %157, %152 : vector<8x128xf32>
    %159 = arith.mulf %158, %156 : vector<8x128xf32>
    %160 = arith.mulf %152, %122 : vector<8x128xf32>
    %161 = arith.addf %159, %160 : vector<8x128xf32>
    %162 = arith.index_cast %c3_i32 : i32 to index
    %c0_52 = arith.constant 0 : index
    %c0_53 = arith.constant 0 : index
    %163 = vector.load %arg10[%162, %c0_52, %c0_53] : memref<6x8x128xf32, #tpu.memory_space<vmem>>, vector<1x8x128xf32>
    %164 = vector.shape_cast %163 : vector<1x8x128xf32> to vector<8x128xf32>
    %165 = vector.shape_cast %161 : vector<8x128xf32> to vector<1x8x128xf32>
    tpu.vector_store %arg10[%162, %c0_52, %c0_53], %165 {strides = array<i32>} : memref<6x8x128xf32, #tpu.memory_space<vmem>>, vector<1x8x128xf32>,
    %c4_i32 = arith.constant 4 : i32
    %166 = arith.index_cast %c4_i32 : i32 to index
    %c0_54 = arith.constant 0 : index
    %c0_55 = arith.constant 0 : index
    %167 = vector.load %arg2[%166, %c0_54, %c0_55] : memref<6x8x384xf32, #tpu.memory_space<vmem>>, vector<1x8x384xf32>
    %168 = vector.shape_cast %167 : vector<1x8x384xf32> to vector<8x384xf32>
    %169 = arith.mulf %161, %3 : vector<8x128xf32>
    %170 = arith.truncf %169 : vector<8x128xf32> to vector<8x128xbf16>
    %cst_56 = arith.constant dense<0.000000e+00> : vector<8x128xf32>
    %171 = tpu.matmul %170, %6, %cst_56 {dimension_numbers = #tpu.dot_dimension_numbers<[1], [0], [0], [1], [0, 0, 1, 1], [], []>} : vector<8x128xbf16>, vector<128x128xbf16>, vector<8x128xf32> -> vector<8x128xf32>
    %172 = arith.mulf %161, %4 : vector<8x128xf32>
    %173 = arith.truncf %172 : vector<8x128xf32> to vector<8x128xbf16>
    %cst_57 = arith.constant dense<0.000000e+00> : vector<8x128xf32>
    %174 = tpu.matmul %173, %7, %cst_57 {dimension_numbers = #tpu.dot_dimension_numbers<[1], [0], [0], [1], [0, 0, 1, 1], [], []>} : vector<8x128xbf16>, vector<128x128xbf16>, vector<8x128xf32> -> vector<8x128xf32>
    %175 = arith.mulf %161, %5 : vector<8x128xf32>
    %176 = arith.truncf %175 : vector<8x128xf32> to vector<8x128xbf16>
    %cst_58 = arith.constant dense<0.000000e+00> : vector<8x128xf32>
    %177 = tpu.matmul %176, %8, %cst_58 {dimension_numbers = #tpu.dot_dimension_numbers<[1], [0], [0], [1], [0, 0, 1, 1], [], []>} : vector<8x128xbf16>, vector<128x128xbf16>, vector<8x128xf32> -> vector<8x128xf32>
    %178 = vector.extract_strided_slice %168 {offsets = [0, 0], sizes = [8, 128], strides = [1, 1]} : vector<8x384xf32> to vector<8x128xf32>
    %179 = arith.addf %178, %171 : vector<8x128xf32>
    %180 = arith.negf %179 : vector<8x128xf32>
    %181 = math.exp %180 : vector<8x128xf32>
    %cst_59 = arith.constant 1.000000e+00 : f32
    %182 = vector.broadcast %cst_59 : f32 to vector<8x128xf32>
    %183 = arith.addf %182, %181 : vector<8x128xf32>
    %184 = arith.divf %182, %183 : vector<8x128xf32>
    %185 = vector.extract_strided_slice %168 {offsets = [0, 128], sizes = [8, 128], strides = [1, 1]} : vector<8x384xf32> to vector<8x128xf32>
    %186 = arith.addf %185, %174 : vector<8x128xf32>
    %187 = arith.negf %186 : vector<8x128xf32>
    %188 = math.exp %187 : vector<8x128xf32>
    %cst_60 = arith.constant 1.000000e+00 : f32
    %189 = vector.broadcast %cst_60 : f32 to vector<8x128xf32>
    %190 = arith.addf %189, %188 : vector<8x128xf32>
    %191 = arith.divf %189, %190 : vector<8x128xf32>
    %192 = vector.extract_strided_slice %168 {offsets = [0, 256], sizes = [8, 128], strides = [1, 1]} : vector<8x384xf32> to vector<8x128xf32>
    %193 = arith.mulf %184, %177 : vector<8x128xf32>
    %194 = arith.addf %192, %193 : vector<8x128xf32>
    %195 = math.tanh %194 : vector<8x128xf32>
    %cst_61 = arith.constant 1.000000e+00 : f32
    %196 = vector.broadcast %cst_61 : f32 to vector<8x128xf32>
    %197 = arith.subf %196, %191 : vector<8x128xf32>
    %198 = arith.mulf %197, %195 : vector<8x128xf32>
    %199 = arith.mulf %191, %161 : vector<8x128xf32>
    %200 = arith.addf %198, %199 : vector<8x128xf32>
    %201 = arith.index_cast %c4_i32 : i32 to index
    %c0_62 = arith.constant 0 : index
    %c0_63 = arith.constant 0 : index
    %202 = vector.load %arg10[%201, %c0_62, %c0_63] : memref<6x8x128xf32, #tpu.memory_space<vmem>>, vector<1x8x128xf32>
    %203 = vector.shape_cast %202 : vector<1x8x128xf32> to vector<8x128xf32>
    %204 = vector.shape_cast %200 : vector<8x128xf32> to vector<1x8x128xf32>
    tpu.vector_store %arg10[%201, %c0_62, %c0_63], %204 {strides = array<i32>} : memref<6x8x128xf32, #tpu.memory_space<vmem>>, vector<1x8x128xf32>,
    %c5_i32 = arith.constant 5 : i32
    %205 = arith.index_cast %c5_i32 : i32 to index
    %c0_64 = arith.constant 0 : index
    %c0_65 = arith.constant 0 : index
    %206 = vector.load %arg2[%205, %c0_64, %c0_65] : memref<6x8x384xf32, #tpu.memory_space<vmem>>, vector<1x8x384xf32>
    %207 = vector.shape_cast %206 : vector<1x8x384xf32> to vector<8x384xf32>
    %208 = arith.mulf %200, %3 : vector<8x128xf32>
    %209 = arith.truncf %208 : vector<8x128xf32> to vector<8x128xbf16>
    %cst_66 = arith.constant dense<0.000000e+00> : vector<8x128xf32>
    %210 = tpu.matmul %209, %6, %cst_66 {dimension_numbers = #tpu.dot_dimension_numbers<[1], [0], [0], [1], [0, 0, 1, 1], [], []>} : vector<8x128xbf16>, vector<128x128xbf16>, vector<8x128xf32> -> vector<8x128xf32>
    %211 = arith.mulf %200, %4 : vector<8x128xf32>
    %212 = arith.truncf %211 : vector<8x128xf32> to vector<8x128xbf16>
    %cst_67 = arith.constant dense<0.000000e+00> : vector<8x128xf32>
    %213 = tpu.matmul %212, %7, %cst_67 {dimension_numbers = #tpu.dot_dimension_numbers<[1], [0], [0], [1], [0, 0, 1, 1], [], []>} : vector<8x128xbf16>, vector<128x128xbf16>, vector<8x128xf32> -> vector<8x128xf32>
    %214 = arith.mulf %200, %5 : vector<8x128xf32>
    %215 = arith.truncf %214 : vector<8x128xf32> to vector<8x128xbf16>
    %cst_68 = arith.constant dense<0.000000e+00> : vector<8x128xf32>
    %216 = tpu.matmul %215, %8, %cst_68 {dimension_numbers = #tpu.dot_dimension_numbers<[1], [0], [0], [1], [0, 0, 1, 1], [], []>} : vector<8x128xbf16>, vector<128x128xbf16>, vector<8x128xf32> -> vector<8x128xf32>
    %217 = vector.extract_strided_slice %207 {offsets = [0, 0], sizes = [8, 128], strides = [1, 1]} : vector<8x384xf32> to vector<8x128xf32>
    %218 = arith.addf %217, %210 : vector<8x128xf32>
    %219 = arith.negf %218 : vector<8x128xf32>
    %220 = math.exp %219 : vector<8x128xf32>
    %cst_69 = arith.constant 1.000000e+00 : f32
    %221 = vector.broadcast %cst_69 : f32 to vector<8x128xf32>
    %222 = arith.addf %221, %220 : vector<8x128xf32>
    %223 = arith.divf %221, %222 : vector<8x128xf32>
    %224 = vector.extract_strided_slice %207 {offsets = [0, 128], sizes = [8, 128], strides = [1, 1]} : vector<8x384xf32> to vector<8x128xf32>
    %225 = arith.addf %224, %213 : vector<8x128xf32>
    %226 = arith.negf %225 : vector<8x128xf32>
    %227 = math.exp %226 : vector<8x128xf32>
    %cst_70 = arith.constant 1.000000e+00 : f32
    %228 = vector.broadcast %cst_70 : f32 to vector<8x128xf32>
    %229 = arith.addf %228, %227 : vector<8x128xf32>
    %230 = arith.divf %228, %229 : vector<8x128xf32>
    %231 = vector.extract_strided_slice %207 {offsets = [0, 256], sizes = [8, 128], strides = [1, 1]} : vector<8x384xf32> to vector<8x128xf32>
    %232 = arith.mulf %223, %216 : vector<8x128xf32>
    %233 = arith.addf %231, %232 : vector<8x128xf32>
    %234 = math.tanh %233 : vector<8x128xf32>
    %cst_71 = arith.constant 1.000000e+00 : f32
    %235 = vector.broadcast %cst_71 : f32 to vector<8x128xf32>
    %236 = arith.subf %235, %230 : vector<8x128xf32>
    %237 = arith.mulf %236, %234 : vector<8x128xf32>
    %238 = arith.mulf %230, %200 : vector<8x128xf32>
    %239 = arith.addf %237, %238 : vector<8x128xf32>
    %240 = arith.index_cast %c5_i32 : i32 to index
    %c0_72 = arith.constant 0 : index
    %c0_73 = arith.constant 0 : index
    %241 = vector.load %arg10[%240, %c0_72, %c0_73] : memref<6x8x128xf32, #tpu.memory_space<vmem>>, vector<1x8x128xf32>
    %242 = vector.shape_cast %241 : vector<1x8x128xf32> to vector<8x128xf32>
    %243 = vector.shape_cast %239 : vector<8x128xf32> to vector<1x8x128xf32>
    tpu.vector_store %arg10[%240, %c0_72, %c0_73], %243 {strides = array<i32>} : memref<6x8x128xf32, #tpu.memory_space<vmem>>, vector<1x8x128xf32>,
    %c6_i32 = arith.constant 6 : i32
    %c0_74 = arith.constant 0 : index
    %c0_75 = arith.constant 0 : index
    %244 = vector.load %arg11[%c0_74, %c0_75] : memref<8x128xf32, #tpu.memory_space<vmem>>, vector<8x128xf32>
    tpu.vector_store %arg11[%c0_74, %c0_75], %239 {strides = array<i32>} : memref<8x128xf32, #tpu.memory_space<vmem>>, vector<8x128xf32>,
    return
  }
  func.func @transform_0(%arg0: i32, %arg1: i32) -> (i32, i32, i32) {
    %c0_i32 = arith.constant 0 : i32
    %c0_i32_0 = arith.constant 0 : i32
    return %arg1, %arg0, %c0_i32 : i32, i32, i32
  }
  func.func @transform_1(%arg0: i32, %arg1: i32) -> (i32, i32) {
    %c0_i32 = arith.constant 0 : i32
    %c0_i32_0 = arith.constant 0 : i32
    return %arg0, %c0_i32 : i32, i32
  }
  func.func @transform_2(%arg0: i32, %arg1: i32) -> (i32, i32) {
    %c0_i32 = arith.constant 0 : i32
    %c0_i32_0 = arith.constant 0 : i32
    return %arg0, %c0_i32 : i32, i32
  }
  func.func @transform_3(%arg0: i32, %arg1: i32) -> (i32, i32) {
    %c0_i32 = arith.constant 0 : i32
    %c0_i32_0 = arith.constant 0 : i32
    return %arg0, %c0_i32 : i32, i32
  }
  func.func @transform_4(%arg0: i32, %arg1: i32) -> (i32, i32) {
    %c0_i32 = arith.constant 0 : i32
    %c0_i32_0 = arith.constant 0 : i32
    return %arg0, %c0_i32 : i32, i32
  }
  func.func @transform_5(%arg0: i32, %arg1: i32) -> (i32, i32) {
    %c0_i32 = arith.constant 0 : i32
    %c0_i32_0 = arith.constant 0 : i32
    %c0_i32_1 = arith.constant 0 : i32
    return %c0_i32, %c0_i32_0 : i32, i32
  }
  func.func @transform_6(%arg0: i32, %arg1: i32) -> (i32, i32) {
    %c0_i32 = arith.constant 0 : i32
    %c0_i32_0 = arith.constant 0 : i32
    %c0_i32_1 = arith.constant 0 : i32
    return %c0_i32, %c0_i32_0 : i32, i32
  }
  func.func @transform_7(%arg0: i32, %arg1: i32) -> (i32, i32) {
    %c0_i32 = arith.constant 0 : i32
    %c0_i32_0 = arith.constant 0 : i32
    %c0_i32_1 = arith.constant 0 : i32
    return %c0_i32, %c0_i32_0 : i32, i32
  }
  func.func @transform_8(%arg0: i32, %arg1: i32) -> (i32, i32, i32) {
    %c0_i32 = arith.constant 0 : i32
    %c0_i32_0 = arith.constant 0 : i32
    return %arg1, %arg0, %c0_i32 : i32, i32, i32
  }
}

</mosaic_0001>

<llo_original>
// kernel: tpu_custom_call.1
$region0: #{tpu_custom_call.1}
  #allocation0 [shape = 'u32[]', space=smem, size = 0x4, offset = 0x4, fixed_abs, tag = 'smem constant byte address 0x4 - core index']
  #allocation1 [shape = 'u32[144,128]{1,0:T(1,128)}', space=vmem, size = 0x12000, scoped, tag = 'internal scratch']
  #allocation2 [shape = 'f32[8,128]{1,0:T(8,128)}', space=vmem, size = 0x1000, scoped, tag = 'scratch operand']
  %s0 = inlined_call_operand.hbm [shape: f32[6,8,384], index: 0, kind: input, shape index: {}]
  %s1 = inlined_call_operand.hbm [shape: f32[8,128], index: 1, kind: input, shape index: {}]
  %s2 = inlined_call_operand.hbm [shape: f32[8,128], index: 2, kind: input, shape index: {}]
  %s3 = inlined_call_operand.vmem [shape: f32[8,128], index: 3, kind: input, shape index: {}]
  %s4 = inlined_call_operand.hbm [shape: f32[8,128], index: 4, kind: input, shape index: {}]
  %s5 = inlined_call_operand.hbm [shape: bf16[128,128], index: 5, kind: input, shape index: {}]
  %s6 = inlined_call_operand.hbm [shape: bf16[128,128], index: 6, kind: input, shape index: {}]
  %s7 = inlined_call_operand.hbm [shape: bf16[128,128], index: 7, kind: input, shape index: {}]
  %s8 = inlined_call_operand.hbm [shape: f32[6,8,128], index: 8, kind: output, shape index: {}]
  %s9 = sld [smem:[#allocation0]]
  $region74: #{tpu_custom_call.1} parent=0
    _
  %s11 = ssub.s32 1, %s9
  %s12 = scalar_select 0, %s11, %s9
  $region1: #{tpu_custom_call.1} parent=0
    #allocation3 [shape = 'u8[73728]{0}', space=vmem, size = 0x12000, scoped, tag = 'input window, operand 0, single buffered']
    #allocation4 [shape = 's32[1]{0}', space=sflag, size = 0x4, scoped, tag = 'scoped memory for tpu_custom_call.1']
    #allocation5 [shape = 's32[1]{0}', space=sflag, size = 0x4, scoped, tag = 'scoped memory for tpu_custom_call.1']
    #allocation6 [shape = 'u8[4096]{0}', space=vmem, size = 0x1000, scoped, tag = 'input window, operand 1, single buffered']
    #allocation7 [shape = 's32[1]{0}', space=sflag, size = 0x4, scoped, tag = 'scoped memory for tpu_custom_call.1']
    #allocation8 [shape = 'u8[4096]{0}', space=vmem, size = 0x1000, scoped, tag = 'input window, operand 2, single buffered']
    #allocation9 [shape = 'u8[4096]{0}', space=vmem, size = 0x1000, scoped, tag = 'input window, operand 4, single buffered']
    #allocation10 [shape = 's32[1]{0}', space=sflag, size = 0x4, scoped, tag = 'scoped memory for tpu_custom_call.1']
    #allocation11 [shape = 'u8[32768]{0}', space=vmem, size = 0x8000, scoped, tag = 'input window, operand 5, single buffered']
    #allocation12 [shape = 'u8[32768]{0}', space=vmem, size = 0x8000, scoped, tag = 'input window, operand 6, single buffered']
    #allocation13 [shape = 's32[1]{0}', space=sflag, size = 0x4, scoped, tag = 'scoped memory for tpu_custom_call.1']
    #allocation14 [shape = 'u8[32768]{0}', space=vmem, size = 0x8000, scoped, tag = 'input window, operand 7, single buffered']
    #allocation15 [shape = 'u8[24576]{0}', space=vmem, size = 0x6000, scoped, tag = 'output window, operand 0, single buffered']
    %13 = vsyncpa [#allocation4], 0
    %14 = vsyncpa [#allocation7], 0
    %15 = vsyncpa [#allocation10], 0
    %16 = vsyncpa [#allocation13], 0
    %17 = vsyncpa [#allocation5], 0
    // Predicated region
    $region2: #{tpu_custom_call.1} parent=1 // pred_check
      _
    $region3: #{tpu_custom_call.1} parent=1 // pred_check_branch
      %19 = sbr.rel (0) target = $region5
    $region4: #{tpu_custom_call.1} parent=1 // pred_region
      %s21 = ssub.s32 2304, 2304
      %22 = vsyncadd [#allocation4], %s21
      %s23 = sshll.u32 [#allocation3], 4
      %s24 = int_to_ptr.vmem [resolvable:$true] %s23
      %29 = dma.hbm_to_vmem [thread:$0]  %s0, 2304, %s24, [#allocation4], 384, 384, 24
    $region5: #{tpu_custom_call.1} parent=1 // pred_fallthru
      _
    // Predicated region
    $region6: #{tpu_custom_call.1} parent=1 // pred_check
      _
    $region7: #{tpu_custom_call.1} parent=1 // pred_check_branch
      %31 = sbr.rel (0) target = $region9
    $region8: #{tpu_custom_call.1} parent=1 // pred_region
      %s33 = ssub.s32 128, 128
      %34 = vsyncadd [#allocation7], %s33
      %s36 = sshll.u32 [#allocation6], 4
      %s37 = int_to_ptr.vmem [resolvable:$true] %s36
      %39 = dma.hbm_to_vmem [thread:$0]  %s1, 128, %s37, [#allocation7]
    $region9: #{tpu_custom_call.1} parent=1 // pred_fallthru
      _
    // Predicated region
    $region10: #{tpu_custom_call.1} parent=1 // pred_check
      _
    $region11: #{tpu_custom_call.1} parent=1 // pred_check_branch
      %41 = sbr.rel (0) target = $region13
    $region12: #{tpu_custom_call.1} parent=1 // pred_region
      %s43 = ssub.s32 128, 128
      %44 = vsyncadd [#allocation7], %s43
      %s46 = sshll.u32 [#allocation8], 4
      %s47 = int_to_ptr.vmem [resolvable:$true] %s46
      %49 = dma.hbm_to_vmem [thread:$0]  %s2, 128, %s47, [#allocation7]
    $region13: #{tpu_custom_call.1} parent=1 // pred_fallthru
      _
    // Predicated region
    $region14: #{tpu_custom_call.1} parent=1 // pred_check
      _
    $region15: #{tpu_custom_call.1} parent=1 // pred_check_branch
      %51 = sbr.rel (0) target = $region17
    $region16: #{tpu_custom_call.1} parent=1 // pred_region
      _
    $region17: #{tpu_custom_call.1} parent=1 // pred_fallthru
      _
    // Predicated region
    $region18: #{tpu_custom_call.1} parent=1 // pred_check
      _
    $region19: #{tpu_custom_call.1} parent=1 // pred_check_branch
      %53 = sbr.rel (0) target = $region21
    $region20: #{tpu_custom_call.1} parent=1 // pred_region
      %s55 = ssub.s32 128, 128
      %56 = vsyncadd [#allocation10], %s55
      %s58 = sshll.u32 [#allocation9], 4
      %s59 = int_to_ptr.vmem [resolvable:$true] %s58
      %61 = dma.hbm_to_vmem [thread:$0]  %s4, 128, %s59, [#allocation10]
    $region21: #{tpu_custom_call.1} parent=1 // pred_fallthru
      _
    // Predicated region
    $region22: #{tpu_custom_call.1} parent=1 // pred_check
      _
    $region23: #{tpu_custom_call.1} parent=1 // pred_check_branch
      %63 = sbr.rel (0) target = $region25
    $region24: #{tpu_custom_call.1} parent=1 // pred_region
      %s65 = ssub.s32 1024, 1024
      %66 = vsyncadd [#allocation10], %s65
      %s67 = sshll.u32 [#allocation11], 4
      %s68 = int_to_ptr.vmem [resolvable:$true] %s67
      %73 = dma.hbm_to_vmem [thread:$0]  %s5, 1024, %s68, [#allocation10], 64, 64, 4
    $region25: #{tpu_custom_call.1} parent=1 // pred_fallthru
      _
    // Predicated region
    $region26: #{tpu_custom_call.1} parent=1 // pred_check
      _
    $region27: #{tpu_custom_call.1} parent=1 // pred_check_branch
      %75 = sbr.rel (0) target = $region29
    $region28: #{tpu_custom_call.1} parent=1 // pred_region
      %s77 = ssub.s32 1024, 1024
      %78 = vsyncadd [#allocation13], %s77
      %s79 = sshll.u32 [#allocation12], 4
      %s80 = int_to_ptr.vmem [resolvable:$true] %s79
      %85 = dma.hbm_to_vmem [thread:$0]  %s6, 1024, %s80, [#allocation13], 64, 64, 4
    $region29: #{tpu_custom_call.1} parent=1 // pred_fallthru
      _
    // Predicated region
    $region30: #{tpu_custom_call.1} parent=1 // pred_check
      _
    $region31: #{tpu_custom_call.1} parent=1 // pred_check_branch
      %87 = sbr.rel (0) target = $region33
    $region32: #{tpu_custom_call.1} parent=1 // pred_region
      %s89 = ssub.s32 1024, 1024
      %90 = vsyncadd [#allocation13], %s89
      %s91 = sshll.u32 [#allocation14], 4
      %s92 = int_to_ptr.vmem [resolvable:$true] %s91
      %97 = dma.hbm_to_vmem [thread:$0]  %s7, 1024, %s92, [#allocation13], 64, 64, 4
    $region33: #{tpu_custom_call.1} parent=1 // pred_fallthru
      _
    // Predicated region
    $region34: #{tpu_custom_call.1} parent=1 // pred_check
      _
    $region35: #{tpu_custom_call.1} parent=1 // pred_check_branch
      %99 = sbr.rel (0) target = $region37
    $region36: #{tpu_custom_call.1} parent=1 // pred_region
      %100 = dma.done [#allocation4], 2304
    $region37: #{tpu_custom_call.1} parent=1 // pred_fallthru
      _
    // Predicated region
    $region38: #{tpu_custom_call.1} parent=1 // pred_check
      _
    $region39: #{tpu_custom_call.1} parent=1 // pred_check_branch
      %102 = sbr.rel (0) target = $region41
    $region40: #{tpu_custom_call.1} parent=1 // pred_region
      %103 = dma.done [#allocation7], 128
    $region41: #{tpu_custom_call.1} parent=1 // pred_fallthru
      _
    // Predicated region
    $region42: #{tpu_custom_call.1} parent=1 // pred_check
      _
    $region43: #{tpu_custom_call.1} parent=1 // pred_check_branch
      %105 = sbr.rel (0) target = $region45
    $region44: #{tpu_custom_call.1} parent=1 // pred_region
      %106 = dma.done [#allocation7], 128
    $region45: #{tpu_custom_call.1} parent=1 // pred_fallthru
      _
    // Predicated region
    $region46: #{tpu_custom_call.1} parent=1 // pred_check
      _
    $region47: #{tpu_custom_call.1} parent=1 // pred_check_branch
      %108 = sbr.rel (0) target = $region49
    $region48: #{tpu_custom_call.1} parent=1 // pred_region
      %109 = dma.done [#allocation10], 128
    $region49: #{tpu_custom_call.1} parent=1 // pred_fallthru
      _
    // Predicated region
    $region50: #{tpu_custom_call.1} parent=1 // pred_check
      _
    $region51: #{tpu_custom_call.1} parent=1 // pred_check_branch
      %111 = sbr.rel (0) target = $region53
    $region52: #{tpu_custom_call.1} parent=1 // pred_region
      %112 = dma.done [#allocation10], 1024
    $region53: #{tpu_custom_call.1} parent=1 // pred_fallthru
      _
    // Predicated region
    $region54: #{tpu_custom_call.1} parent=1 // pred_check
      _
    $region55: #{tpu_custom_call.1} parent=1 // pred_check_branch
      %114 = sbr.rel (0) target = $region57
    $region56: #{tpu_custom_call.1} parent=1 // pred_region
      %115 = dma.done [#allocation13], 1024
    $region57: #{tpu_custom_call.1} parent=1 // pred_fallthru
      _
    // Predicated region
    $region58: #{tpu_custom_call.1} parent=1 // pred_check
      _
    $region59: #{tpu_custom_call.1} parent=1 // pred_check_branch
      %117 = sbr.rel (0) target = $region61
    $region60: #{tpu_custom_call.1} parent=1 // pred_region
      %118 = dma.done [#allocation13], 1024
    $region61: #{tpu_custom_call.1} parent=1 // pred_fallthru
      _
    %p120 = scmp.eq.s32.totalorder 0, 0
    // Predicated region
    $region62: #{tpu_custom_call.1} parent=1 // pred_check
      %p121 = pneg %p120
    $region63: #{tpu_custom_call.1} parent=1 // pred_check_branch
      %123 = sbr.rel (%p121) target = $region65
    $region64: #{tpu_custom_call.1} parent=1 // pred_region
      %v124 = vld [vmem:[#allocation6] sm:$0xff]
      %125 = vst [vmem:[#allocation2] sm:$0xff] %v124
    $region65: #{tpu_custom_call.1} parent=1 // pred_fallthru
      _
    %v126 = vld [vmem:[#allocation8] sm:$0xff]
    %v127 = vld [vmem:[%s3] sm:$0xff]
    %v128 = vld [vmem:[#allocation9] sm:$0xff]
    %v129 = vld [vmem:[#allocation11] sm:$0xf]
    %v130 = vld [vmem:[#allocation11 + $0x4] sm:$0xf]
    %v131 = vld [vmem:[#allocation11 + $0x8] sm:$0xf]
    %v132 = vld [vmem:[#allocation11 + $0xc] sm:$0xf]
    %v133 = vld [vmem:[#allocation11 + $0x10] sm:$0xf]
    %v134 = vld [vmem:[#allocation11 + $0x14] sm:$0xf]
    %v135 = vld [vmem:[#allocation11 + $0x18] sm:$0xf]
    %v136 = vld [vmem:[#allocation11 + $0x1c] sm:$0xf]
    %v137 = vld [vmem:[#allocation11 + $0x20] sm:$0xf]
    %v138 = vld [vmem:[#allocation11 + $0x24] sm:$0xf]
    %v139 = vld [vmem:[#allocation11 + $0x28] sm:$0xf]
    %v140 = vld [vmem:[#allocation11 + $0x2c] sm:$0xf]
    %v141 = vld [vmem:[#allocation11 + $0x30] sm:$0xf]
    %v142 = vld [vmem:[#allocation11 + $0x34] sm:$0xf]
    %v143 = vld [vmem:[#allocation11 + $0x38] sm:$0xf]
    %v144 = vld [vmem:[#allocation11 + $0x3c] sm:$0xf]
    %v145 = vld [vmem:[#allocation12] sm:$0xf]
    %v146 = vld [vmem:[#allocation12 + $0x4] sm:$0xf]
    %v147 = vld [vmem:[#allocation12 + $0x8] sm:$0xf]
    %v148 = vld [vmem:[#allocation12 + $0xc] sm:$0xf]
    %v149 = vld [vmem:[#allocation12 + $0x10] sm:$0xf]
    %v150 = vld [vmem:[#allocation12 + $0x14] sm:$0xf]
    %v151 = vld [vmem:[#allocation12 + $0x18] sm:$0xf]
    %v152 = vld [vmem:[#allocation12 + $0x1c] sm:$0xf]
    %v153 = vld [vmem:[#allocation12 + $0x20] sm:$0xf]
    %v154 = vld [vmem:[#allocation12 + $0x24] sm:$0xf]
    %v155 = vld [vmem:[#allocation12 + $0x28] sm:$0xf]
    %v156 = vld [vmem:[#allocation12 + $0x2c] sm:$0xf]
    %v157 = vld [vmem:[#allocation12 + $0x30] sm:$0xf]
    %v158 = vld [vmem:[#allocation12 + $0x34] sm:$0xf]
    %v159 = vld [vmem:[#allocation12 + $0x38] sm:$0xf]
    %v160 = vld [vmem:[#allocation12 + $0x3c] sm:$0xf]
    %v161 = vld [vmem:[#allocation14] sm:$0xf]
    %v162 = vld [vmem:[#allocation14 + $0x4] sm:$0xf]
    %v163 = vld [vmem:[#allocation14 + $0x8] sm:$0xf]
    %v164 = vld [vmem:[#allocation14 + $0xc] sm:$0xf]
    %v165 = vld [vmem:[#allocation14 + $0x10] sm:$0xf]
    %v166 = vld [vmem:[#allocation14 + $0x14] sm:$0xf]
    %v167 = vld [vmem:[#allocation14 + $0x18] sm:$0xf]
    %v168 = vld [vmem:[#allocation14 + $0x1c] sm:$0xf]
    %v169 = vld [vmem:[#allocation14 + $0x20] sm:$0xf]
    %v170 = vld [vmem:[#allocation14 + $0x24] sm:$0xf]
    %v171 = vld [vmem:[#allocation14 + $0x28] sm:$0xf]
    %v172 = vld [vmem:[#allocation14 + $0x2c] sm:$0xf]
    %v173 = vld [vmem:[#allocation14 + $0x30] sm:$0xf]
    %v174 = vld [vmem:[#allocation14 + $0x34] sm:$0xf]
    %v175 = vld [vmem:[#allocation14 + $0x38] sm:$0xf]
    %v176 = vld [vmem:[#allocation14 + $0x3c] sm:$0xf]
    %v177 = vld [vmem:[#allocation2] sm:$0xff]
    %v178 = vld [vmem:[#allocation3] sm:$0xff]
    %v179 = vld [vmem:[#allocation3 + $0x8] sm:$0xff]
    %v180 = vld [vmem:[#allocation3 + $0x10] sm:$0xff]
    %v181 = vmul.f32 %v177, %v126
    %v182 = vpack.c.bf16 %v181, %v181
    %v199 = vunpack.c.l.b16 %v129
    %v200 = vunpack.c.l.b16 %v130
    %v201 = vunpack.c.l.b16 %v131
    %v202 = vunpack.c.l.b16 %v132
    %v203 = vunpack.c.l.b16 %v133
    %v204 = vunpack.c.l.b16 %v134
    %v205 = vunpack.c.l.b16 %v135
    %v206 = vunpack.c.l.b16 %v136
    %v207 = vunpack.c.l.b16 %v137
    %v208 = vunpack.c.l.b16 %v138
    %v209 = vunpack.c.l.b16 %v139
    %v210 = vunpack.c.l.b16 %v140
    %v211 = vunpack.c.l.b16 %v141
    %v212 = vunpack.c.l.b16 %v142
    %v213 = vunpack.c.l.b16 %v143
    %v214 = vunpack.c.l.b16 %v144
    %v215 = vpack.c.b16 %v200, %v199
    %v216 = vpack.c.b16 %v202, %v201
    %v217 = vpack.c.b16 %v204, %v203
    %v218 = vpack.c.b16 %v206, %v205
    %v219 = vpack.c.b16 %v208, %v207
    %v220 = vpack.c.b16 %v210, %v209
    %v221 = vpack.c.b16 %v212, %v211
    %v222 = vpack.c.b16 %v214, %v213
    %231 = vmatprep.subr.bf16.mxu0 0
    %232 = vmatpush1.bf16.msra.mxu0 %v215
    %233 = vmatprep.subr.bf16.mxu0 0
    %234 = vmatpush1.bf16.msra.mxu0 %v216
    %235 = vmatprep.subr.bf16.mxu0 0
    %236 = vmatpush1.bf16.msra.mxu0 %v217
    %237 = vmatprep.subr.bf16.mxu0 0
    %238 = vmatpush1.bf16.msra.mxu0 %v218
    %239 = vmatprep.subr.bf16.mxu0 0
    %240 = vmatpush1.bf16.msra.mxu0 %v219
    %241 = vmatprep.subr.bf16.mxu0 0
    %242 = vmatpush1.bf16.msra.mxu0 %v220
    %243 = vmatprep.subr.bf16.mxu0 0
    %244 = vmatpush1.bf16.msra.mxu0 %v221
    %245 = vmatprep.subr.bf16.mxu0 0
    %246 = vmatpush1.bf16.msra.mxu0 %v222
    %247 = vmatprep.subr.bf16.mxu0 0
    %248 = vmatpush1.bf16.msra.mxu0 0
    %249 = vmatprep.subr.bf16.mxu0 0
    %250 = vmatpush1.bf16.msra.mxu0 0
    %251 = vmatprep.subr.bf16.mxu0 0
    %252 = vmatpush1.bf16.msra.mxu0 0
    %253 = vmatprep.subr.bf16.mxu0 0
    %254 = vmatpush1.bf16.msra.mxu0 0
    %255 = vmatprep.subr.bf16.mxu0 0
    %256 = vmatpush1.bf16.msra.mxu0 0
    %257 = vmatprep.subr.bf16.mxu0 0
    %258 = vmatpush1.bf16.msra.mxu0 0
    %259 = vmatprep.subr.bf16.mxu0 0
    %260 = vmatpush1.bf16.msra.mxu0 0
    %261 = vmatprep.subr.bf16.mxu0 0
    %262 = vmatpush1.bf16.msra.mxu0 0
    %263 = vmatprep.mubr.bf16.mxu0 0
    %264 = vmatmul.mubr.bf16.gmra.mrb[0].mxu0 %v182
    %v265 = vpop.f32.mrb[0].mxu0
    %v266 = vadd.f32 0.0, %v265
    %v267 = vpop.f32.mrb[0].mxu0
    %v268 = vpop.f32.mrb[0].mxu0
    %v269 = vpop.f32.mrb[0].mxu0
    %270 = vdwg.mxu0
    %v271 = vmul.f32 %v177, %v127
    %v272 = vpack.c.bf16 %v271, %v271
    %v289 = vunpack.c.l.b16 %v145
    %v290 = vunpack.c.l.b16 %v146
    %v291 = vunpack.c.l.b16 %v147
    %v292 = vunpack.c.l.b16 %v148
    %v293 = vunpack.c.l.b16 %v149
    %v294 = vunpack.c.l.b16 %v150
    %v295 = vunpack.c.l.b16 %v151
    %v296 = vunpack.c.l.b16 %v152
    %v297 = vunpack.c.l.b16 %v153
    %v298 = vunpack.c.l.b16 %v154
    %v299 = vunpack.c.l.b16 %v155
    %v300 = vunpack.c.l.b16 %v156
    %v301 = vunpack.c.l.b16 %v157
    %v302 = vunpack.c.l.b16 %v158
    %v303 = vunpack.c.l.b16 %v159
    %v304 = vunpack.c.l.b16 %v160
    %v305 = vpack.c.b16 %v290, %v289
    %v306 = vpack.c.b16 %v292, %v291
    %v307 = vpack.c.b16 %v294, %v293
    %v308 = vpack.c.b16 %v296, %v295
    %v309 = vpack.c.b16 %v298, %v297
    %v310 = vpack.c.b16 %v300, %v299
    %v311 = vpack.c.b16 %v302, %v301
    %v312 = vpack.c.b16 %v304, %v303
    %321 = vmatprep.subr.bf16.mxu0 0
    %322 = vmatpush1.bf16.msra.mxu0 %v305
    %323 = vmatprep.subr.bf16.mxu0 0
    %324 = vmatpush1.bf16.msra.mxu0 %v306
    %325 = vmatprep.subr.bf16.mxu0 0
    %326 = vmatpush1.bf16.msra.mxu0 %v307
    %327 = vmatprep.subr.bf16.mxu0 0
    %328 = vmatpush1.bf16.msra.mxu0 %v308
    %329 = vmatprep.subr.bf16.mxu0 0
    %330 = vmatpush1.bf16.msra.mxu0 %v309
    %331 = vmatprep.subr.bf16.mxu0 0
    %332 = vmatpush1.bf16.msra.mxu0 %v310
    %333 = vmatprep.subr.bf16.mxu0 0
    %334 = vmatpush1.bf16.msra.mxu0 %v311
    %335 = vmatprep.subr.bf16.mxu0 0
    %336 = vmatpush1.bf16.msra.mxu0 %v312
    %337 = vmatprep.subr.bf16.mxu0 0
    %338 = vmatpush1.bf16.msra.mxu0 0
    %339 = vmatprep.subr.bf16.mxu0 0
    %340 = vmatpush1.bf16.msra.mxu0 0
    %341 = vmatprep.subr.bf16.mxu0 0
    %342 = vmatpush1.bf16.msra.mxu0 0
    %343 = vmatprep.subr.bf16.mxu0 0
    %344 = vmatpush1.bf16.msra.mxu0 0
    %345 = vmatprep.subr.bf16.mxu0 0
    %346 = vmatpush1.bf16.msra.mxu0 0
    %347 = vmatprep.subr.bf16.mxu0 0
    %348 = vmatpush1.bf16.msra.mxu0 0
    %349 = vmatprep.subr.bf16.mxu0 0
    %350 = vmatpush1.bf16.msra.mxu0 0
    %351 = vmatprep.subr.bf16.mxu0 0
    %352 = vmatpush1.bf16.msra.mxu0 0
    %353 = vmatprep.mubr.bf16.mxu0 0
    %354 = vmatmul.mubr.bf16.gmra.mrb[0].mxu0 %v272
    %v355 = vpop.f32.mrb[0].mxu0
    %v356 = vadd.f32 0.0, %v355
    %v357 = vpop.f32.mrb[0].mxu0
    %v358 = vpop.f32.mrb[0].mxu0
    %v359 = vpop.f32.mrb[0].mxu0
    %360 = vdwg.mxu0
    %v361 = vmul.f32 %v177, %v128
    %v362 = vpack.c.bf16 %v361, %v361
    %v379 = vunpack.c.l.b16 %v161
    %v380 = vunpack.c.l.b16 %v162
    %v381 = vunpack.c.l.b16 %v163
    %v382 = vunpack.c.l.b16 %v164
    %v383 = vunpack.c.l.b16 %v165
    %v384 = vunpack.c.l.b16 %v166
    %v385 = vunpack.c.l.b16 %v167
    %v386 = vunpack.c.l.b16 %v168
    %v387 = vunpack.c.l.b16 %v169
    %v388 = vunpack.c.l.b16 %v170
    %v389 = vunpack.c.l.b16 %v171
    %v390 = vunpack.c.l.b16 %v172
    %v391 = vunpack.c.l.b16 %v173
    %v392 = vunpack.c.l.b16 %v174
    %v393 = vunpack.c.l.b16 %v175
    %v394 = vunpack.c.l.b16 %v176
    %v395 = vpack.c.b16 %v380, %v379
    %v396 = vpack.c.b16 %v382, %v381
    %v397 = vpack.c.b16 %v384, %v383
    %v398 = vpack.c.b16 %v386, %v385
    %v399 = vpack.c.b16 %v388, %v387
    %v400 = vpack.c.b16 %v390, %v389
    %v401 = vpack.c.b16 %v392, %v391
    %v402 = vpack.c.b16 %v394, %v393
    %411 = vmatprep.subr.bf16.mxu0 0
    %412 = vmatpush1.bf16.msra.mxu0 %v395
    %413 = vmatprep.subr.bf16.mxu0 0
    %414 = vmatpush1.bf16.msra.mxu0 %v396
    %415 = vmatprep.subr.bf16.mxu0 0
    %416 = vmatpush1.bf16.msra.mxu0 %v397
    %417 = vmatprep.subr.bf16.mxu0 0
    %418 = vmatpush1.bf16.msra.mxu0 %v398
    %419 = vmatprep.subr.bf16.mxu0 0
    %420 = vmatpush1.bf16.msra.mxu0 %v399
    %421 = vmatprep.subr.bf16.mxu0 0
    %422 = vmatpush1.bf16.msra.mxu0 %v400
    %423 = vmatprep.subr.bf16.mxu0 0
    %424 = vmatpush1.bf16.msra.mxu0 %v401
    %425 = vmatprep.subr.bf16.mxu0 0
    %426 = vmatpush1.bf16.msra.mxu0 %v402
    %427 = vmatprep.subr.bf16.mxu0 0
    %428 = vmatpush1.bf16.msra.mxu0 0
    %429 = vmatprep.subr.bf16.mxu0 0
    %430 = vmatpush1.bf16.msra.mxu0 0
    %431 = vmatprep.subr.bf16.mxu0 0
    %432 = vmatpush1.bf16.msra.mxu0 0
    %433 = vmatprep.subr.bf16.mxu0 0
    %434 = vmatpush1.bf16.msra.mxu0 0
    %435 = vmatprep.subr.bf16.mxu0 0
    %436 = vmatpush1.bf16.msra.mxu0 0
    %437 = vmatprep.subr.bf16.mxu0 0
    %438 = vmatpush1.bf16.msra.mxu0 0
    %439 = vmatprep.subr.bf16.mxu0 0
    %440 = vmatpush1.bf16.msra.mxu0 0
    %441 = vmatprep.subr.bf16.mxu0 0
    %442 = vmatpush1.bf16.msra.mxu0 0
    %443 = vmatprep.mubr.bf16.mxu0 0
    %444 = vmatmul.mubr.bf16.gmra.mrb[0].mxu0 %v362
    %v445 = vpop.f32.mrb[0].mxu0
    %v446 = vadd.f32 0.0, %v445
    %v447 = vpop.f32.mrb[0].mxu0
    %v448 = vpop.f32.mrb[0].mxu0
    %v449 = vpop.f32.mrb[0].mxu0
    %450 = vdwg.mxu0
    %v451 = vadd.f32 %v178, %v266
    %v452 = vxor.u32 %v451, 2147483648
    %v453 = vmul.f32 %v452, 1.442695
    %v454 = vpow.pop %v453
    %v455 = vadd.f32 %v454, 1.0
    %v456 = vrcp.pop %v455
    %v457 = vmul.f32 1.0, %v456
    %v458 = vadd.f32 %v179, %v356
    %v459 = vxor.u32 %v458, 2147483648
    %v460 = vmul.f32 %v459, 1.442695
    %v461 = vpow.pop %v460
    %v462 = vadd.f32 %v461, 1.0
    %v463 = vrcp.pop %v462
    %v464 = vmul.f32 1.0, %v463
    %v465 = vmul.f32 %v457, %v446
    %v466 = vadd.f32 %v180, %v465
    %v467 = vtanh.pop %v466
    %v468 = vsub.f32 1.0, %v464
    %v469 = vmul.f32 %v468, %v467
    %v470 = vmul.f32 %v464, %v177
    %v471 = vadd.f32 %v469, %v470
    %472 = vst [vmem:[#allocation15] sm:$0xff] %v471
    %s473 = scalar_lea.vmem [#allocation3], 24
    %v474 = vld [vmem:[%s473] sm:$0xff]
    %v475 = vld [vmem:[%s473 + $0x8] sm:$0xff]
    %v476 = vld [vmem:[%s473 + $0x10] sm:$0xff]
    %v477 = vmul.f32 %v471, %v126
    %v478 = vpack.c.bf16 %v477, %v477
    %479 = vmatprep.subr.bf16.mxu0 0
    %480 = vmatpush1.bf16.msra.mxu0 %v215
    %481 = vmatprep.subr.bf16.mxu0 0
    %482 = vmatpush1.bf16.msra.mxu0 %v216
    %483 = vmatprep.subr.bf16.mxu0 0
    %484 = vmatpush1.bf16.msra.mxu0 %v217
    %485 = vmatprep.subr.bf16.mxu0 0
    %486 = vmatpush1.bf16.msra.mxu0 %v218
    %487 = vmatprep.subr.bf16.mxu0 0
    %488 = vmatpush1.bf16.msra.mxu0 %v219
    %489 = vmatprep.subr.bf16.mxu0 0
    %490 = vmatpush1.bf16.msra.mxu0 %v220
    %491 = vmatprep.subr.bf16.mxu0 0
    %492 = vmatpush1.bf16.msra.mxu0 %v221
    %493 = vmatprep.subr.bf16.mxu0 0
    %494 = vmatpush1.bf16.msra.mxu0 %v222
    %495 = vmatprep.subr.bf16.mxu0 0
    %496 = vmatpush1.bf16.msra.mxu0 0
    %497 = vmatprep.subr.bf16.mxu0 0
    %498 = vmatpush1.bf16.msra.mxu0 0
    %499 = vmatprep.subr.bf16.mxu0 0
    %500 = vmatpush1.bf16.msra.mxu0 0
    %501 = vmatprep.subr.bf16.mxu0 0
    %502 = vmatpush1.bf16.msra.mxu0 0
    %503 = vmatprep.subr.bf16.mxu0 0
    %504 = vmatpush1.bf16.msra.mxu0 0
    %505 = vmatprep.subr.bf16.mxu0 0
    %506 = vmatpush1.bf16.msra.mxu0 0
    %507 = vmatprep.subr.bf16.mxu0 0
    %508 = vmatpush1.bf16.msra.mxu0 0
    %509 = vmatprep.subr.bf16.mxu0 0
    %510 = vmatpush1.bf16.msra.mxu0 0
    %511 = vmatprep.mubr.bf16.mxu0 0
    %512 = vmatmul.mubr.bf16.gmra.mrb[0].mxu0 %v478
    %v513 = vpop.f32.mrb[0].mxu0
    %v514 = vadd.f32 0.0, %v513
    %v515 = vpop.f32.mrb[0].mxu0
    %v516 = vpop.f32.mrb[0].mxu0
    %v517 = vpop.f32.mrb[0].mxu0
    %518 = vdwg.mxu0
    %v519 = vmul.f32 %v471, %v127
    %v520 = vpack.c.bf16 %v519, %v519
    %521 = vmatprep.subr.bf16.mxu0 0
    %522 = vmatpush1.bf16.msra.mxu0 %v305
    %523 = vmatprep.subr.bf16.mxu0 0
    %524 = vmatpush1.bf16.msra.mxu0 %v306
    %525 = vmatprep.subr.bf16.mxu0 0
    %526 = vmatpush1.bf16.msra.mxu0 %v307
    %527 = vmatprep.subr.bf16.mxu0 0
    %528 = vmatpush1.bf16.msra.mxu0 %v308
    %529 = vmatprep.subr.bf16.mxu0 0
    %530 = vmatpush1.bf16.msra.mxu0 %v309
    %531 = vmatprep.subr.bf16.mxu0 0
    %532 = vmatpush1.bf16.msra.mxu0 %v310
    %533 = vmatprep.subr.bf16.mxu0 0
    %534 = vmatpush1.bf16.msra.mxu0 %v311
    %535 = vmatprep.subr.bf16.mxu0 0
    %536 = vmatpush1.bf16.msra.mxu0 %v312
    %537 = vmatprep.subr.bf16.mxu0 0
    %538 = vmatpush1.bf16.msra.mxu0 0
    %539 = vmatprep.subr.bf16.mxu0 0
    %540 = vmatpush1.bf16.msra.mxu0 0
    %541 = vmatprep.subr.bf16.mxu0 0
    %542 = vmatpush1.bf16.msra.mxu0 0
    %543 = vmatprep.subr.bf16.mxu0 0
    %544 = vmatpush1.bf16.msra.mxu0 0
    %545 = vmatprep.subr.bf16.mxu0 0
    %546 = vmatpush1.bf16.msra.mxu0 0
    %547 = vmatprep.subr.bf16.mxu0 0
    %548 = vmatpush1.bf16.msra.mxu0 0
    %549 = vmatprep.subr.bf16.mxu0 0
    %550 = vmatpush1.bf16.msra.mxu0 0
    %551 = vmatprep.subr.bf16.mxu0 0
    %552 = vmatpush1.bf16.msra.mxu0 0
    %553 = vmatprep.mubr.bf16.mxu0 0
    %554 = vmatmul.mubr.bf16.gmra.mrb[0].mxu0 %v520
    %v555 = vpop.f32.mrb[0].mxu0
    %v556 = vadd.f32 0.0, %v555
    %v557 = vpop.f32.mrb[0].mxu0
    %v558 = vpop.f32.mrb[0].mxu0
    %v559 = vpop.f32.mrb[0].mxu0
    %560 = vdwg.mxu0
    %v561 = vmul.f32 %v471, %v128
    %v562 = vpack.c.bf16 %v561, %v561
    %563 = vmatprep.subr.bf16.mxu0 0
    %564 = vmatpush1.bf16.msra.mxu0 %v395
    %565 = vmatprep.subr.bf16.mxu0 0
    %566 = vmatpush1.bf16.msra.mxu0 %v396
    %567 = vmatprep.subr.bf16.mxu0 0
    %568 = vmatpush1.bf16.msra.mxu0 %v397
    %569 = vmatprep.subr.bf16.mxu0 0
    %570 = vmatpush1.bf16.msra.mxu0 %v398
    %571 = vmatprep.subr.bf16.mxu0 0
    %572 = vmatpush1.bf16.msra.mxu0 %v399
    %573 = vmatprep.subr.bf16.mxu0 0
    %574 = vmatpush1.bf16.msra.mxu0 %v400
    %575 = vmatprep.subr.bf16.mxu0 0
    %576 = vmatpush1.bf16.msra.mxu0 %v401
    %577 = vmatprep.subr.bf16.mxu0 0
    %578 = vmatpush1.bf16.msra.mxu0 %v402
    %579 = vmatprep.subr.bf16.mxu0 0
    %580 = vmatpush1.bf16.msra.mxu0 0
    %581 = vmatprep.subr.bf16.mxu0 0
    %582 = vmatpush1.bf16.msra.mxu0 0
    %583 = vmatprep.subr.bf16.mxu0 0
    %584 = vmatpush1.bf16.msra.mxu0 0
    %585 = vmatprep.subr.bf16.mxu0 0
    %586 = vmatpush1.bf16.msra.mxu0 0
    %587 = vmatprep.subr.bf16.mxu0 0
    %588 = vmatpush1.bf16.msra.mxu0 0
    %589 = vmatprep.subr.bf16.mxu0 0
    %590 = vmatpush1.bf16.msra.mxu0 0
    %591 = vmatprep.subr.bf16.mxu0 0
    %592 = vmatpush1.bf16.msra.mxu0 0
    %593 = vmatprep.subr.bf16.mxu0 0
    %594 = vmatpush1.bf16.msra.mxu0 0
    %595 = vmatprep.mubr.bf16.mxu0 0
    %596 = vmatmul.mubr.bf16.gmra.mrb[0].mxu0 %v562
    %v597 = vpop.f32.mrb[0].mxu0
    %v598 = vadd.f32 0.0, %v597
    %v599 = vpop.f32.mrb[0].mxu0
    %v600 = vpop.f32.mrb[0].mxu0
    %v601 = vpop.f32.mrb[0].mxu0
    %602 = vdwg.mxu0
    %v603 = vadd.f32 %v474, %v514
    %v604 = vxor.u32 %v603, 2147483648
    %v605 = vmul.f32 %v604, 1.442695
    %v606 = vpow.pop %v605
    %v607 = vadd.f32 %v606, 1.0
    %v608 = vrcp.pop %v607
    %v609 = vmul.f32 1.0, %v608
    %v610 = vadd.f32 %v475, %v556
    %v611 = vxor.u32 %v610, 2147483648
    %v612 = vmul.f32 %v611, 1.442695
    %v613 = vpow.pop %v612
    %v614 = vadd.f32 %v613, 1.0
    %v615 = vrcp.pop %v614
    %v616 = vmul.f32 1.0, %v615
    %v617 = vmul.f32 %v609, %v598
    %v618 = vadd.f32 %v476, %v617
    %v619 = vtanh.pop %v618
    %v620 = vsub.f32 1.0, %v616
    %v621 = vmul.f32 %v620, %v619
    %v622 = vmul.f32 %v616, %v471
    %v623 = vadd.f32 %v621, %v622
    %s624 = scalar_lea.vmem [#allocation15], 8
    %625 = vst [vmem:[%s624] sm:$0xff] %v623
    %s626 = scalar_lea.vmem [#allocation3], 48
    %v627 = vld [vmem:[%s626] sm:$0xff]
    %v628 = vld [vmem:[%s626 + $0x8] sm:$0xff]
    %v629 = vld [vmem:[%s626 + $0x10] sm:$0xff]
    %v630 = vmul.f32 %v623, %v126
    %v631 = vpack.c.bf16 %v630, %v630
    %632 = vmatprep.subr.bf16.mxu0 0
    %633 = vmatpush1.bf16.msra.mxu0 %v215
    %634 = vmatprep.subr.bf16.mxu0 0
    %635 = vmatpush1.bf16.msra.mxu0 %v216
    %636 = vmatprep.subr.bf16.mxu0 0
    %637 = vmatpush1.bf16.msra.mxu0 %v217
    %638 = vmatprep.subr.bf16.mxu0 0
    %639 = vmatpush1.bf16.msra.mxu0 %v218
    %640 = vmatprep.subr.bf16.mxu0 0
    %641 = vmatpush1.bf16.msra.mxu0 %v219
    %642 = vmatprep.subr.bf16.mxu0 0
    %643 = vmatpush1.bf16.msra.mxu0 %v220
    %644 = vmatprep.subr.bf16.mxu0 0
    %645 = vmatpush1.bf16.msra.mxu0 %v221
    %646 = vmatprep.subr.bf16.mxu0 0
    %647 = vmatpush1.bf16.msra.mxu0 %v222
    %648 = vmatprep.subr.bf16.mxu0 0
    %649 = vmatpush1.bf16.msra.mxu0 0
    %650 = vmatprep.subr.bf16.mxu0 0
    %651 = vmatpush1.bf16.msra.mxu0 0
    %652 = vmatprep.subr.bf16.mxu0 0
    %653 = vmatpush1.bf16.msra.mxu0 0
    %654 = vmatprep.subr.bf16.mxu0 0
    %655 = vmatpush1.bf16.msra.mxu0 0
    %656 = vmatprep.subr.bf16.mxu0 0
    %657 = vmatpush1.bf16.msra.mxu0 0
    %658 = vmatprep.subr.bf16.mxu0 0
    %659 = vmatpush1.bf16.msra.mxu0 0
    %660 = vmatprep.subr.bf16.mxu0 0
    %661 = vmatpush1.bf16.msra.mxu0 0
    %662 = vmatprep.subr.bf16.mxu0 0
    %663 = vmatpush1.bf16.msra.mxu0 0
    %664 = vmatprep.mubr.bf16.mxu0 0
    %665 = vmatmul.mubr.bf16.gmra.mrb[0].mxu0 %v631
    %v666 = vpop.f32.mrb[0].mxu0
    %v667 = vadd.f32 0.0, %v666
    %v668 = vpop.f32.mrb[0].mxu0
    %v669 = vpop.f32.mrb[0].mxu0
    %v670 = vpop.f32.mrb[0].mxu0
    %671 = vdwg.mxu0
    %v672 = vmul.f32 %v623, %v127
    %v673 = vpack.c.bf16 %v672, %v672
    %674 = vmatprep.subr.bf16.mxu0 0
    %675 = vmatpush1.bf16.msra.mxu0 %v305
    %676 = vmatprep.subr.bf16.mxu0 0
    %677 = vmatpush1.bf16.msra.mxu0 %v306
    %678 = vmatprep.subr.bf16.mxu0 0
    %679 = vmatpush1.bf16.msra.mxu0 %v307
    %680 = vmatprep.subr.bf16.mxu0 0
    %681 = vmatpush1.bf16.msra.mxu0 %v308
    %682 = vmatprep.subr.bf16.mxu0 0
    %683 = vmatpush1.bf16.msra.mxu0 %v309
    %684 = vmatprep.subr.bf16.mxu0 0
    %685 = vmatpush1.bf16.msra.mxu0 %v310
    %686 = vmatprep.subr.bf16.mxu0 0
    %687 = vmatpush1.bf16.msra.mxu0 %v311
    %688 = vmatprep.subr.bf16.mxu0 0
    %689 = vmatpush1.bf16.msra.mxu0 %v312
    %690 = vmatprep.subr.bf16.mxu0 0
    %691 = vmatpush1.bf16.msra.mxu0 0
    %692 = vmatprep.subr.bf16.mxu0 0
    %693 = vmatpush1.bf16.msra.mxu0 0
    %694 = vmatprep.subr.bf16.mxu0 0
    %695 = vmatpush1.bf16.msra.mxu0 0
    %696 = vmatprep.subr.bf16.mxu0 0
    %697 = vmatpush1.bf16.msra.mxu0 0
    %698 = vmatprep.subr.bf16.mxu0 0
    %699 = vmatpush1.bf16.msra.mxu0 0
    %700 = vmatprep.subr.bf16.mxu0 0
    %701 = vmatpush1.bf16.msra.mxu0 0
    %702 = vmatprep.subr.bf16.mxu0 0
    %703 = vmatpush1.bf16.msra.mxu0 0
    %704 = vmatprep.subr.bf16.mxu0 0
    %705 = vmatpush1.bf16.msra.mxu0 0
    %706 = vmatprep.mubr.bf16.mxu0 0
    %707 = vmatmul.mubr.bf16.gmra.mrb[0].mxu0 %v673
    %v708 = vpop.f32.mrb[0].mxu0
    %v709 = vadd.f32 0.0, %v708
    %v710 = vpop.f32.mrb[0].mxu0
    %v711 = vpop.f32.mrb[0].mxu0
    %v712 = vpop.f32.mrb[0].mxu0
    %713 = vdwg.mxu0
    %v714 = vmul.f32 %v623, %v128
    %v715 = vpack.c.bf16 %v714, %v714
    %716 = vmatprep.subr.bf16.mxu0 0
    %717 = vmatpush1.bf16.msra.mxu0 %v395
    %718 = vmatprep.subr.bf16.mxu0 0
    %719 = vmatpush1.bf16.msra.mxu0 %v396
    %720 = vmatprep.subr.bf16.mxu0 0
    %721 = vmatpush1.bf16.msra.mxu0 %v397
    %722 = vmatprep.subr.bf16.mxu0 0
    %723 = vmatpush1.bf16.msra.mxu0 %v398
    %724 = vmatprep.subr.bf16.mxu0 0
    %725 = vmatpush1.bf16.msra.mxu0 %v399
    %726 = vmatprep.subr.bf16.mxu0 0
    %727 = vmatpush1.bf16.msra.mxu0 %v400
    %728 = vmatprep.subr.bf16.mxu0 0
    %729 = vmatpush1.bf16.msra.mxu0 %v401
    %730 = vmatprep.subr.bf16.mxu0 0
    %731 = vmatpush1.bf16.msra.mxu0 %v402
    %732 = vmatprep.subr.bf16.mxu0 0
    %733 = vmatpush1.bf16.msra.mxu0 0
    %734 = vmatprep.subr.bf16.mxu0 0
    %735 = vmatpush1.bf16.msra.mxu0 0
    %736 = vmatprep.subr.bf16.mxu0 0
    %737 = vmatpush1.bf16.msra.mxu0 0
    %738 = vmatprep.subr.bf16.mxu0 0
    %739 = vmatpush1.bf16.msra.mxu0 0
    %740 = vmatprep.subr.bf16.mxu0 0
    %741 = vmatpush1.bf16.msra.mxu0 0
    %742 = vmatprep.subr.bf16.mxu0 0
    %743 = vmatpush1.bf16.msra.mxu0 0
    %744 = vmatprep.subr.bf16.mxu0 0
    %745 = vmatpush1.bf16.msra.mxu0 0
    %746 = vmatprep.subr.bf16.mxu0 0
    %747 = vmatpush1.bf16.msra.mxu0 0
    %748 = vmatprep.mubr.bf16.mxu0 0
    %749 = vmatmul.mubr.bf16.gmra.mrb[0].mxu0 %v715
    %v750 = vpop.f32.mrb[0].mxu0
    %v751 = vadd.f32 0.0, %v750
    %v752 = vpop.f32.mrb[0].mxu0
    %v753 = vpop.f32.mrb[0].mxu0
    %v754 = vpop.f32.mrb[0].mxu0
    %755 = vdwg.mxu0
    %v756 = vadd.f32 %v627, %v667
    %v757 = vxor.u32 %v756, 2147483648
    %v758 = vmul.f32 %v757, 1.442695
    %v759 = vpow.pop %v758
    %v760 = vadd.f32 %v759, 1.0
    %v761 = vrcp.pop %v760
    %v762 = vmul.f32 1.0, %v761
    %v763 = vadd.f32 %v628, %v709
    %v764 = vxor.u32 %v763, 2147483648
    %v765 = vmul.f32 %v764, 1.442695
    %v766 = vpow.pop %v765
    %v767 = vadd.f32 %v766, 1.0
    %v768 = vrcp.pop %v767
    %v769 = vmul.f32 1.0, %v768
    %v770 = vmul.f32 %v762, %v751
    %v771 = vadd.f32 %v629, %v770
    %v772 = vtanh.pop %v771
    %v773 = vsub.f32 1.0, %v769
    %v774 = vmul.f32 %v773, %v772
    %v775 = vmul.f32 %v769, %v623
    %v776 = vadd.f32 %v774, %v775
    %s777 = scalar_lea.vmem [#allocation15], 16
    %778 = vst [vmem:[%s777] sm:$0xff] %v776
    %s779 = scalar_lea.vmem [#allocation3], 72
    %v780 = vld [vmem:[%s779] sm:$0xff]
    %v781 = vld [vmem:[%s779 + $0x8] sm:$0xff]
    %v782 = vld [vmem:[%s779 + $0x10] sm:$0xff]
    %v783 = vmul.f32 %v776, %v126
    %v784 = vpack.c.bf16 %v783, %v783
    %785 = vmatprep.subr.bf16.mxu0 0
    %786 = vmatpush1.bf16.msra.mxu0 %v215
    %787 = vmatprep.subr.bf16.mxu0 0
    %788 = vmatpush1.bf16.msra.mxu0 %v216
    %789 = vmatprep.subr.bf16.mxu0 0
    %790 = vmatpush1.bf16.msra.mxu0 %v217
    %791 = vmatprep.subr.bf16.mxu0 0
    %792 = vmatpush1.bf16.msra.mxu0 %v218
    %793 = vmatprep.subr.bf16.mxu0 0
    %794 = vmatpush1.bf16.msra.mxu0 %v219
    %795 = vmatprep.subr.bf16.mxu0 0
    %796 = vmatpush1.bf16.msra.mxu0 %v220
    %797 = vmatprep.subr.bf16.mxu0 0
    %798 = vmatpush1.bf16.msra.mxu0 %v221
    %799 = vmatprep.subr.bf16.mxu0 0
    %800 = vmatpush1.bf16.msra.mxu0 %v222
    %801 = vmatprep.subr.bf16.mxu0 0
    %802 = vmatpush1.bf16.msra.mxu0 0
    %803 = vmatprep.subr.bf16.mxu0 0
    %804 = vmatpush1.bf16.msra.mxu0 0
    %805 = vmatprep.subr.bf16.mxu0 0
    %806 = vmatpush1.bf16.msra.mxu0 0
    %807 = vmatprep.subr.bf16.mxu0 0
    %808 = vmatpush1.bf16.msra.mxu0 0
    %809 = vmatprep.subr.bf16.mxu0 0
    %810 = vmatpush1.bf16.msra.mxu0 0
    %811 = vmatprep.subr.bf16.mxu0 0
    %812 = vmatpush1.bf16.msra.mxu0 0
    %813 = vmatprep.subr.bf16.mxu0 0
    %814 = vmatpush1.bf16.msra.mxu0 0
    %815 = vmatprep.subr.bf16.mxu0 0
    %816 = vmatpush1.bf16.msra.mxu0 0
    %817 = vmatprep.mubr.bf16.mxu0 0
    %818 = vmatmul.mubr.bf16.gmra.mrb[0].mxu0 %v784
    %v819 = vpop.f32.mrb[0].mxu0
    %v820 = vadd.f32 0.0, %v819
    %v821 = vpop.f32.mrb[0].mxu0
    %v822 = vpop.f32.mrb[0].mxu0
    %v823 = vpop.f32.mrb[0].mxu0
    %824 = vdwg.mxu0
    %v825 = vmul.f32 %v776, %v127
    %v826 = vpack.c.bf16 %v825, %v825
    %827 = vmatprep.subr.bf16.mxu0 0
    %828 = vmatpush1.bf16.msra.mxu0 %v305
    %829 = vmatprep.subr.bf16.mxu0 0
    %830 = vmatpush1.bf16.msra.mxu0 %v306
    %831 = vmatprep.subr.bf16.mxu0 0
    %832 = vmatpush1.bf16.msra.mxu0 %v307
    %833 = vmatprep.subr.bf16.mxu0 0
    %834 = vmatpush1.bf16.msra.mxu0 %v308
    %835 = vmatprep.subr.bf16.mxu0 0
    %836 = vmatpush1.bf16.msra.mxu0 %v309
    %837 = vmatprep.subr.bf16.mxu0 0
    %838 = vmatpush1.bf16.msra.mxu0 %v310
    %839 = vmatprep.subr.bf16.mxu0 0
    %840 = vmatpush1.bf16.msra.mxu0 %v311
    %841 = vmatprep.subr.bf16.mxu0 0
    %842 = vmatpush1.bf16.msra.mxu0 %v312
    %843 = vmatprep.subr.bf16.mxu0 0
    %844 = vmatpush1.bf16.msra.mxu0 0
    %845 = vmatprep.subr.bf16.mxu0 0
    %846 = vmatpush1.bf16.msra.mxu0 0
    %847 = vmatprep.subr.bf16.mxu0 0
    %848 = vmatpush1.bf16.msra.mxu0 0
    %849 = vmatprep.subr.bf16.mxu0 0
    %850 = vmatpush1.bf16.msra.mxu0 0
    %851 = vmatprep.subr.bf16.mxu0 0
    %852 = vmatpush1.bf16.msra.mxu0 0
    %853 = vmatprep.subr.bf16.mxu0 0
    %854 = vmatpush1.bf16.msra.mxu0 0
    %855 = vmatprep.subr.bf16.mxu0 0
    %856 = vmatpush1.bf16.msra.mxu0 0
    %857 = vmatprep.subr.bf16.mxu0 0
    %858 = vmatpush1.bf16.msra.mxu0 0
    %859 = vmatprep.mubr.bf16.mxu0 0
    %860 = vmatmul.mubr.bf16.gmra.mrb[0].mxu0 %v826
    %v861 = vpop.f32.mrb[0].mxu0
    %v862 = vadd.f32 0.0, %v861
    %v863 = vpop.f32.mrb[0].mxu0
    %v864 = vpop.f32.mrb[0].mxu0
    %v865 = vpop.f32.mrb[0].mxu0
    %866 = vdwg.mxu0
    %v867 = vmul.f32 %v776, %v128
    %v868 = vpack.c.bf16 %v867, %v867
    %869 = vmatprep.subr.bf16.mxu0 0
    %870 = vmatpush1.bf16.msra.mxu0 %v395
    %871 = vmatprep.subr.bf16.mxu0 0
    %872 = vmatpush1.bf16.msra.mxu0 %v396
    %873 = vmatprep.subr.bf16.mxu0 0
    %874 = vmatpush1.bf16.msra.mxu0 %v397
    %875 = vmatprep.subr.bf16.mxu0 0
    %876 = vmatpush1.bf16.msra.mxu0 %v398
    %877 = vmatprep.subr.bf16.mxu0 0
    %878 = vmatpush1.bf16.msra.mxu0 %v399
    %879 = vmatprep.subr.bf16.mxu0 0
    %880 = vmatpush1.bf16.msra.mxu0 %v400
    %881 = vmatprep.subr.bf16.mxu0 0
    %882 = vmatpush1.bf16.msra.mxu0 %v401
    %883 = vmatprep.subr.bf16.mxu0 0
    %884 = vmatpush1.bf16.msra.mxu0 %v402
    %885 = vmatprep.subr.bf16.mxu0 0
    %886 = vmatpush1.bf16.msra.mxu0 0
    %887 = vmatprep.subr.bf16.mxu0 0
    %888 = vmatpush1.bf16.msra.mxu0 0
    %889 = vmatprep.subr.bf16.mxu0 0
    %890 = vmatpush1.bf16.msra.mxu0 0
    %891 = vmatprep.subr.bf16.mxu0 0
    %892 = vmatpush1.bf16.msra.mxu0 0
    %893 = vmatprep.subr.bf16.mxu0 0
    %894 = vmatpush1.bf16.msra.mxu0 0
    %895 = vmatprep.subr.bf16.mxu0 0
    %896 = vmatpush1.bf16.msra.mxu0 0
    %897 = vmatprep.subr.bf16.mxu0 0
    %898 = vmatpush1.bf16.msra.mxu0 0
    %899 = vmatprep.subr.bf16.mxu0 0
    %900 = vmatpush1.bf16.msra.mxu0 0
    %901 = vmatprep.mubr.bf16.mxu0 0
    %902 = vmatmul.mubr.bf16.gmra.mrb[0].mxu0 %v868
    %v903 = vpop.f32.mrb[0].mxu0
    %v904 = vadd.f32 0.0, %v903
    %v905 = vpop.f32.mrb[0].mxu0
    %v906 = vpop.f32.mrb[0].mxu0
    %v907 = vpop.f32.mrb[0].mxu0
    %908 = vdwg.mxu0
    %v909 = vadd.f32 %v780, %v820
    %v910 = vxor.u32 %v909, 2147483648
    %v911 = vmul.f32 %v910, 1.442695
    %v912 = vpow.pop %v911
    %v913 = vadd.f32 %v912, 1.0
    %v914 = vrcp.pop %v913
    %v915 = vmul.f32 1.0, %v914
    %v916 = vadd.f32 %v781, %v862
    %v917 = vxor.u32 %v916, 2147483648
    %v918 = vmul.f32 %v917, 1.442695
    %v919 = vpow.pop %v918
    %v920 = vadd.f32 %v919, 1.0
    %v921 = vrcp.pop %v920
    %v922 = vmul.f32 1.0, %v921
    %v923 = vmul.f32 %v915, %v904
    %v924 = vadd.f32 %v782, %v923
    %v925 = vtanh.pop %v924
    %v926 = vsub.f32 1.0, %v922
    %v927 = vmul.f32 %v926, %v925
    %v928 = vmul.f32 %v922, %v776
    %v929 = vadd.f32 %v927, %v928
    %s930 = scalar_lea.vmem [#allocation15], 24
    %931 = vst [vmem:[%s930] sm:$0xff] %v929
    %s932 = scalar_lea.vmem [#allocation3], 96
    %v933 = vld [vmem:[%s932] sm:$0xff]
    %v934 = vld [vmem:[%s932 + $0x8] sm:$0xff]
    %v935 = vld [vmem:[%s932 + $0x10] sm:$0xff]
    %v936 = vmul.f32 %v929, %v126
    %v937 = vpack.c.bf16 %v936, %v936
    %938 = vmatprep.subr.bf16.mxu0 0
    %939 = vmatpush1.bf16.msra.mxu0 %v215
    %940 = vmatprep.subr.bf16.mxu0 0
    %941 = vmatpush1.bf16.msra.mxu0 %v216
    %942 = vmatprep.subr.bf16.mxu0 0
    %943 = vmatpush1.bf16.msra.mxu0 %v217
    %944 = vmatprep.subr.bf16.mxu0 0
    %945 = vmatpush1.bf16.msra.mxu0 %v218
    %946 = vmatprep.subr.bf16.mxu0 0
    %947 = vmatpush1.bf16.msra.mxu0 %v219
    %948 = vmatprep.subr.bf16.mxu0 0
    %949 = vmatpush1.bf16.msra.mxu0 %v220
    %950 = vmatprep.subr.bf16.mxu0 0
    %951 = vmatpush1.bf16.msra.mxu0 %v221
    %952 = vmatprep.subr.bf16.mxu0 0
    %953 = vmatpush1.bf16.msra.mxu0 %v222
    %954 = vmatprep.subr.bf16.mxu0 0
    %955 = vmatpush1.bf16.msra.mxu0 0
    %956 = vmatprep.subr.bf16.mxu0 0
    %957 = vmatpush1.bf16.msra.mxu0 0
    %958 = vmatprep.subr.bf16.mxu0 0
    %959 = vmatpush1.bf16.msra.mxu0 0
    %960 = vmatprep.subr.bf16.mxu0 0
    %961 = vmatpush1.bf16.msra.mxu0 0
    %962 = vmatprep.subr.bf16.mxu0 0
    %963 = vmatpush1.bf16.msra.mxu0 0
    %964 = vmatprep.subr.bf16.mxu0 0
    %965 = vmatpush1.bf16.msra.mxu0 0
    %966 = vmatprep.subr.bf16.mxu0 0
    %967 = vmatpush1.bf16.msra.mxu0 0
    %968 = vmatprep.subr.bf16.mxu0 0
    %969 = vmatpush1.bf16.msra.mxu0 0
    %970 = vmatprep.mubr.bf16.mxu0 0
    %971 = vmatmul.mubr.bf16.gmra.mrb[0].mxu0 %v937
    %v972 = vpop.f32.mrb[0].mxu0
    %v973 = vadd.f32 0.0, %v972
    %v974 = vpop.f32.mrb[0].mxu0
    %v975 = vpop.f32.mrb[0].mxu0
    %v976 = vpop.f32.mrb[0].mxu0
    %977 = vdwg.mxu0
    %v978 = vmul.f32 %v929, %v127
    %v979 = vpack.c.bf16 %v978, %v978
    %980 = vmatprep.subr.bf16.mxu0 0
    %981 = vmatpush1.bf16.msra.mxu0 %v305
    %982 = vmatprep.subr.bf16.mxu0 0
    %983 = vmatpush1.bf16.msra.mxu0 %v306
    %984 = vmatprep.subr.bf16.mxu0 0
    %985 = vmatpush1.bf16.msra.mxu0 %v307
    %986 = vmatprep.subr.bf16.mxu0 0
    %987 = vmatpush1.bf16.msra.mxu0 %v308
    %988 = vmatprep.subr.bf16.mxu0 0
    %989 = vmatpush1.bf16.msra.mxu0 %v309
    %990 = vmatprep.subr.bf16.mxu0 0
    %991 = vmatpush1.bf16.msra.mxu0 %v310
    %992 = vmatprep.subr.bf16.mxu0 0
    %993 = vmatpush1.bf16.msra.mxu0 %v311
    %994 = vmatprep.subr.bf16.mxu0 0
    %995 = vmatpush1.bf16.msra.mxu0 %v312
    %996 = vmatprep.subr.bf16.mxu0 0
    %997 = vmatpush1.bf16.msra.mxu0 0
    %998 = vmatprep.subr.bf16.mxu0 0
    %999 = vmatpush1.bf16.msra.mxu0 0
    %1000 = vmatprep.subr.bf16.mxu0 0
    %1001 = vmatpush1.bf16.msra.mxu0 0
    %1002 = vmatprep.subr.bf16.mxu0 0
    %1003 = vmatpush1.bf16.msra.mxu0 0
    %1004 = vmatprep.subr.bf16.mxu0 0
    %1005 = vmatpush1.bf16.msra.mxu0 0
    %1006 = vmatprep.subr.bf16.mxu0 0
    %1007 = vmatpush1.bf16.msra.mxu0 0
    %1008 = vmatprep.subr.bf16.mxu0 0
    %1009 = vmatpush1.bf16.msra.mxu0 0
    %1010 = vmatprep.subr.bf16.mxu0 0
    %1011 = vmatpush1.bf16.msra.mxu0 0
    %1012 = vmatprep.mubr.bf16.mxu0 0
    %1013 = vmatmul.mubr.bf16.gmra.mrb[0].mxu0 %v979
    %v1014 = vpop.f32.mrb[0].mxu0
    %v1015 = vadd.f32 0.0, %v1014
    %v1016 = vpop.f32.mrb[0].mxu0
    %v1017 = vpop.f32.mrb[0].mxu0
    %v1018 = vpop.f32.mrb[0].mxu0
    %1019 = vdwg.mxu0
    %v1020 = vmul.f32 %v929, %v128
    %v1021 = vpack.c.bf16 %v1020, %v1020
    %1022 = vmatprep.subr.bf16.mxu0 0
    %1023 = vmatpush1.bf16.msra.mxu0 %v395
    %1024 = vmatprep.subr.bf16.mxu0 0
    %1025 = vmatpush1.bf16.msra.mxu0 %v396
    %1026 = vmatprep.subr.bf16.mxu0 0
    %1027 = vmatpush1.bf16.msra.mxu0 %v397
    %1028 = vmatprep.subr.bf16.mxu0 0
    %1029 = vmatpush1.bf16.msra.mxu0 %v398
    %1030 = vmatprep.subr.bf16.mxu0 0
    %1031 = vmatpush1.bf16.msra.mxu0 %v399
    %1032 = vmatprep.subr.bf16.mxu0 0
    %1033 = vmatpush1.bf16.msra.mxu0 %v400
    %1034 = vmatprep.subr.bf16.mxu0 0
    %1035 = vmatpush1.bf16.msra.mxu0 %v401
    %1036 = vmatprep.subr.bf16.mxu0 0
    %1037 = vmatpush1.bf16.msra.mxu0 %v402
    %1038 = vmatprep.subr.bf16.mxu0 0
    %1039 = vmatpush1.bf16.msra.mxu0 0
    %1040 = vmatprep.subr.bf16.mxu0 0
    %1041 = vmatpush1.bf16.msra.mxu0 0
    %1042 = vmatprep.subr.bf16.mxu0 0
    %1043 = vmatpush1.bf16.msra.mxu0 0
    %1044 = vmatprep.subr.bf16.mxu0 0
    %1045 = vmatpush1.bf16.msra.mxu0 0
    %1046 = vmatprep.subr.bf16.mxu0 0
    %1047 = vmatpush1.bf16.msra.mxu0 0
    %1048 = vmatprep.subr.bf16.mxu0 0
    %1049 = vmatpush1.bf16.msra.mxu0 0
    %1050 = vmatprep.subr.bf16.mxu0 0
    %1051 = vmatpush1.bf16.msra.mxu0 0
    %1052 = vmatprep.subr.bf16.mxu0 0
    %1053 = vmatpush1.bf16.msra.mxu0 0
    %1054 = vmatprep.mubr.bf16.mxu0 0
    %1055 = vmatmul.mubr.bf16.gmra.mrb[0].mxu0 %v1021
    %v1056 = vpop.f32.mrb[0].mxu0
    %v1057 = vadd.f32 0.0, %v1056
    %v1058 = vpop.f32.mrb[0].mxu0
    %v1059 = vpop.f32.mrb[0].mxu0
    %v1060 = vpop.f32.mrb[0].mxu0
    %1061 = vdwg.mxu0
    %v1062 = vadd.f32 %v933, %v973
    %v1063 = vxor.u32 %v1062, 2147483648
    %v1064 = vmul.f32 %v1063, 1.442695
    %v1065 = vpow.pop %v1064
    %v1066 = vadd.f32 %v1065, 1.0
    %v1067 = vrcp.pop %v1066
    %v1068 = vmul.f32 1.0, %v1067
    %v1069 = vadd.f32 %v934, %v1015
    %v1070 = vxor.u32 %v1069, 2147483648
    %v1071 = vmul.f32 %v1070, 1.442695
    %v1072 = vpow.pop %v1071
    %v1073 = vadd.f32 %v1072, 1.0
    %v1074 = vrcp.pop %v1073
    %v1075 = vmul.f32 1.0, %v1074
    %v1076 = vmul.f32 %v1068, %v1057
    %v1077 = vadd.f32 %v935, %v1076
    %v1078 = vtanh.pop %v1077
    %v1079 = vsub.f32 1.0, %v1075
    %v1080 = vmul.f32 %v1079, %v1078
    %v1081 = vmul.f32 %v1075, %v929
    %v1082 = vadd.f32 %v1080, %v1081
    %s1083 = scalar_lea.vmem [#allocation15], 32
    %1084 = vst [vmem:[%s1083] sm:$0xff] %v1082
    %s1085 = scalar_lea.vmem [#allocation3], 120
    %v1086 = vld [vmem:[%s1085] sm:$0xff]
    %v1087 = vld [vmem:[%s1085 + $0x8] sm:$0xff]
    %v1088 = vld [vmem:[%s1085 + $0x10] sm:$0xff]
    %v1089 = vmul.f32 %v1082, %v126
    %v1090 = vpack.c.bf16 %v1089, %v1089
    %1091 = vmatprep.subr.bf16.mxu0 0
    %1092 = vmatpush1.bf16.msra.mxu0 %v215
    %1093 = vmatprep.subr.bf16.mxu0 0
    %1094 = vmatpush1.bf16.msra.mxu0 %v216
    %1095 = vmatprep.subr.bf16.mxu0 0
    %1096 = vmatpush1.bf16.msra.mxu0 %v217
    %1097 = vmatprep.subr.bf16.mxu0 0
    %1098 = vmatpush1.bf16.msra.mxu0 %v218
    %1099 = vmatprep.subr.bf16.mxu0 0
    %1100 = vmatpush1.bf16.msra.mxu0 %v219
    %1101 = vmatprep.subr.bf16.mxu0 0
    %1102 = vmatpush1.bf16.msra.mxu0 %v220
    %1103 = vmatprep.subr.bf16.mxu0 0
    %1104 = vmatpush1.bf16.msra.mxu0 %v221
    %1105 = vmatprep.subr.bf16.mxu0 0
    %1106 = vmatpush1.bf16.msra.mxu0 %v222
    %1107 = vmatprep.subr.bf16.mxu0 0
    %1108 = vmatpush1.bf16.msra.mxu0 0
    %1109 = vmatprep.subr.bf16.mxu0 0
    %1110 = vmatpush1.bf16.msra.mxu0 0
    %1111 = vmatprep.subr.bf16.mxu0 0
    %1112 = vmatpush1.bf16.msra.mxu0 0
    %1113 = vmatprep.subr.bf16.mxu0 0
    %1114 = vmatpush1.bf16.msra.mxu0 0
    %1115 = vmatprep.subr.bf16.mxu0 0
    %1116 = vmatpush1.bf16.msra.mxu0 0
    %1117 = vmatprep.subr.bf16.mxu0 0
    %1118 = vmatpush1.bf16.msra.mxu0 0
    %1119 = vmatprep.subr.bf16.mxu0 0
    %1120 = vmatpush1.bf16.msra.mxu0 0
    %1121 = vmatprep.subr.bf16.mxu0 0
    %1122 = vmatpush1.bf16.msra.mxu0 0
    %1123 = vmatprep.mubr.bf16.mxu0 0
    %1124 = vmatmul.mubr.bf16.gmra.mrb[0].mxu0 %v1090
    %v1125 = vpop.f32.mrb[0].mxu0
    %v1126 = vadd.f32 0.0, %v1125
    %v1127 = vpop.f32.mrb[0].mxu0
    %v1128 = vpop.f32.mrb[0].mxu0
    %v1129 = vpop.f32.mrb[0].mxu0
    %1130 = vdwg.mxu0
    %v1131 = vmul.f32 %v1082, %v127
    %v1132 = vpack.c.bf16 %v1131, %v1131
    %1133 = vmatprep.subr.bf16.mxu0 0
    %1134 = vmatpush1.bf16.msra.mxu0 %v305
    %1135 = vmatprep.subr.bf16.mxu0 0
    %1136 = vmatpush1.bf16.msra.mxu0 %v306
    %1137 = vmatprep.subr.bf16.mxu0 0
    %1138 = vmatpush1.bf16.msra.mxu0 %v307
    %1139 = vmatprep.subr.bf16.mxu0 0
    %1140 = vmatpush1.bf16.msra.mxu0 %v308
    %1141 = vmatprep.subr.bf16.mxu0 0
    %1142 = vmatpush1.bf16.msra.mxu0 %v309
    %1143 = vmatprep.subr.bf16.mxu0 0
    %1144 = vmatpush1.bf16.msra.mxu0 %v310
    %1145 = vmatprep.subr.bf16.mxu0 0
    %1146 = vmatpush1.bf16.msra.mxu0 %v311
    %1147 = vmatprep.subr.bf16.mxu0 0
    %1148 = vmatpush1.bf16.msra.mxu0 %v312
    %1149 = vmatprep.subr.bf16.mxu0 0
    %1150 = vmatpush1.bf16.msra.mxu0 0
    %1151 = vmatprep.subr.bf16.mxu0 0
    %1152 = vmatpush1.bf16.msra.mxu0 0
    %1153 = vmatprep.subr.bf16.mxu0 0
    %1154 = vmatpush1.bf16.msra.mxu0 0
    %1155 = vmatprep.subr.bf16.mxu0 0
    %1156 = vmatpush1.bf16.msra.mxu0 0
    %1157 = vmatprep.subr.bf16.mxu0 0
    %1158 = vmatpush1.bf16.msra.mxu0 0
    %1159 = vmatprep.subr.bf16.mxu0 0
    %1160 = vmatpush1.bf16.msra.mxu0 0
    %1161 = vmatprep.subr.bf16.mxu0 0
    %1162 = vmatpush1.bf16.msra.mxu0 0
    %1163 = vmatprep.subr.bf16.mxu0 0
    %1164 = vmatpush1.bf16.msra.mxu0 0
    %1165 = vmatprep.mubr.bf16.mxu0 0
    %1166 = vmatmul.mubr.bf16.gmra.mrb[0].mxu0 %v1132
    %v1167 = vpop.f32.mrb[0].mxu0
    %v1168 = vadd.f32 0.0, %v1167
    %v1169 = vpop.f32.mrb[0].mxu0
    %v1170 = vpop.f32.mrb[0].mxu0
    %v1171 = vpop.f32.mrb[0].mxu0
    %1172 = vdwg.mxu0
    %v1173 = vmul.f32 %v1082, %v128
    %v1174 = vpack.c.bf16 %v1173, %v1173
    %1175 = vmatprep.subr.bf16.mxu0 0
    %1176 = vmatpush1.bf16.msra.mxu0 %v395
    %1177 = vmatprep.subr.bf16.mxu0 0
    %1178 = vmatpush1.bf16.msra.mxu0 %v396
    %1179 = vmatprep.subr.bf16.mxu0 0
    %1180 = vmatpush1.bf16.msra.mxu0 %v397
    %1181 = vmatprep.subr.bf16.mxu0 0
    %1182 = vmatpush1.bf16.msra.mxu0 %v398
    %1183 = vmatprep.subr.bf16.mxu0 0
    %1184 = vmatpush1.bf16.msra.mxu0 %v399
    %1185 = vmatprep.subr.bf16.mxu0 0
    %1186 = vmatpush1.bf16.msra.mxu0 %v400
    %1187 = vmatprep.subr.bf16.mxu0 0
    %1188 = vmatpush1.bf16.msra.mxu0 %v401
    %1189 = vmatprep.subr.bf16.mxu0 0
    %1190 = vmatpush1.bf16.msra.mxu0 %v402
    %1191 = vmatprep.subr.bf16.mxu0 0
    %1192 = vmatpush1.bf16.msra.mxu0 0
    %1193 = vmatprep.subr.bf16.mxu0 0
    %1194 = vmatpush1.bf16.msra.mxu0 0
    %1195 = vmatprep.subr.bf16.mxu0 0
    %1196 = vmatpush1.bf16.msra.mxu0 0
    %1197 = vmatprep.subr.bf16.mxu0 0
    %1198 = vmatpush1.bf16.msra.mxu0 0
    %1199 = vmatprep.subr.bf16.mxu0 0
    %1200 = vmatpush1.bf16.msra.mxu0 0
    %1201 = vmatprep.subr.bf16.mxu0 0
    %1202 = vmatpush1.bf16.msra.mxu0 0
    %1203 = vmatprep.subr.bf16.mxu0 0
    %1204 = vmatpush1.bf16.msra.mxu0 0
    %1205 = vmatprep.subr.bf16.mxu0 0
    %1206 = vmatpush1.bf16.msra.mxu0 0
    %1207 = vmatprep.mubr.bf16.mxu0 0
    %1208 = vmatmul.mubr.bf16.gmra.mrb[0].mxu0 %v1174
    %v1209 = vpop.f32.mrb[0].mxu0
    %v1210 = vadd.f32 0.0, %v1209
    %v1211 = vpop.f32.mrb[0].mxu0
    %v1212 = vpop.f32.mrb[0].mxu0
    %v1213 = vpop.f32.mrb[0].mxu0
    %1214 = vdwg.mxu0
    %v1215 = vadd.f32 %v1086, %v1126
    %v1216 = vxor.u32 %v1215, 2147483648
    %v1217 = vmul.f32 %v1216, 1.442695
    %v1218 = vpow.pop %v1217
    %v1219 = vadd.f32 %v1218, 1.0
    %v1220 = vrcp.pop %v1219
    %v1221 = vmul.f32 1.0, %v1220
    %v1222 = vadd.f32 %v1087, %v1168
    %v1223 = vxor.u32 %v1222, 2147483648
    %v1224 = vmul.f32 %v1223, 1.442695
    %v1225 = vpow.pop %v1224
    %v1226 = vadd.f32 %v1225, 1.0
    %v1227 = vrcp.pop %v1226
    %v1228 = vmul.f32 1.0, %v1227
    %v1229 = vmul.f32 %v1221, %v1210
    %v1230 = vadd.f32 %v1088, %v1229
    %v1231 = vtanh.pop %v1230
    %v1232 = vsub.f32 1.0, %v1228
    %v1233 = vmul.f32 %v1232, %v1231
    %v1234 = vmul.f32 %v1228, %v1082
    %v1235 = vadd.f32 %v1233, %v1234
    %s1236 = scalar_lea.vmem [#allocation15], 40
    %1237 = vst [vmem:[%s1236] sm:$0xff] %v1235
    %1238 = vst [vmem:[#allocation2] sm:$0xff] %v1235
    // Predicated region
    $region66: #{tpu_custom_call.1} parent=1 // pred_check
      _
    $region67: #{tpu_custom_call.1} parent=1 // pred_check_branch
      %1240 = sbr.rel (0) target = $region69
    $region68: #{tpu_custom_call.1} parent=1 // pred_region
      %s1242 = ssub.s32 768, 768
      %1243 = vsyncadd [#allocation5], %s1242
      %s1244 = sshll.u32 [#allocation15], 4
      %s1245 = int_to_ptr.vmem [resolvable:$true] %s1244
      %1250 = dma.vmem_to_hbm [thread:$0]  %s1245, 768, %s8, [#allocation5], 128, 128, 8
    $region69: #{tpu_custom_call.1} parent=1 // pred_fallthru
      _
    // Predicated region
    $region70: #{tpu_custom_call.1} parent=1 // pred_check
      _
    $region71: #{tpu_custom_call.1} parent=1 // pred_check_branch
      %1252 = sbr.rel (0) target = $region73
    $region72: #{tpu_custom_call.1} parent=1 // pred_region
      %1253 = dma.done [#allocation5], 768
    $region73: #{tpu_custom_call.1} parent=1 // pred_fallthru
      _
    %1254 = vsyncpa [#allocation4], 1
    %1255 = vsyncpa [#allocation7], 1
    %1256 = vsyncpa [#allocation10], 1
    %1257 = vsyncpa [#allocation13], 1
    %1258 = vsyncpa [#allocation5], 1

</llo_original>
